<compile_context>
chip_gen: v7x
topology: tpu7x:2x2x1
jax: 0.10.0
libtpu: 0.0.40
codegen_flags: <defaults>
</compile_context>

<pallas_src>
import math

import jax
import jax.numpy as jnp
from jax.experimental import pallas as pl
from jax.experimental.pallas import tpu as pltpu  # noqa: F401  (kept for scale-up knobs)


# ----------------------------------------------------------------------------
# Fused Pallas kernel
# ----------------------------------------------------------------------------
def _make_fused_rnn_kernel(seq: int, n_layers: int):
    """Ref order:
         x_tm (seq*batch, in0), h0 (L, B, H),
         w_ih0^T (in0, H), bias0 (1, H),
         [ rhs_l = [w_hh^l | w_ih^{l+1}]^T (H, 2H), bias_{l+1} (1, H) ] * (L-1),
         w_hh_last^T (H, H), fc_w^T padded (H, OUT_PAD), fc_b padded (1, OUT_PAD)
       outputs: out (B*T, OUT_PAD), h_n (L, B, H)
    """
    L, T = n_layers, seq

    def kernel(*refs):
        x_ref, h0_ref = refs[0], refs[1]
        w_ih0_ref, b0_ref = refs[2], refs[3]
        rhs_refs = refs[4:4 + 2 * (L - 1)]
        w_hh_last_ref = refs[4 + 2 * (L - 1)]
        fc_w_ref = refs[5 + 2 * (L - 1)]
        fc_b_ref = refs[6 + 2 * (L - 1)]
        out_ref = refs[7 + 2 * (L - 1)]
        hn_ref = refs[8 + 2 * (L - 1)]

        B = hn_ref.shape[1]
        H = hn_ref.shape[2]

        # ---- Hoisted work (off the recurrence critical path) -------------
        # Layer-0 input projection for the whole sequence, time-major rows.
        pre0 = (jnp.dot(x_ref[...], w_ih0_ref[...],
                        preferred_element_type=jnp.float32) + b0_ref[...])

        rhs = [rhs_refs[2 * l][...] for l in range(L - 1)]          # (H, 2H)
        bias_next = [jnp.broadcast_to(rhs_refs[2 * l + 1][...], (B, H))
                     for l in range(L - 1)]                          # hoisted bcast
        w_hh_last = w_hh_last_ref[...]

        # Initial recurrent terms rec0[l] = h0[l] @ W_hh^l (independent ops).
        h = [h0_ref[l] for l in range(L)]
        rec = []
        for l in range(L - 1):
            rec.append(jnp.dot(h[l], rhs[l],
                               preferred_element_type=jnp.float32)[:, :H])
        rec.append(jnp.dot(h[L - 1], w_hh_last,
                           preferred_element_type=jnp.float32))

        # Per-timestep input projections. Layer 0: static sublane-contiguous
        # slices of the hoisted time-major slab; layers >=1 are produced by
        # the wavefront itself.
        inproj = [[None] * T for _ in range(L)]
        for t in range(T):
            inproj[0][t] = pre0[t * B:(t + 1) * B, :]
        last_hs = [None] * T

        # ---- Wavefront over the (layer, time) dependency grid ------------
        # Node (l, t) depends on (l, t-1) and (l-1, t); all nodes on one
        # anti-diagonal are independent, so the MXU can overlap them.
        for w in range(L + T - 1):
            for l in range(max(0, w - T + 1), min(L, w + 1)):
                t = w - l
                h_new = jnp.maximum(inproj[l][t] + rec[l], 0.0)
                h[l] = h_new
                if l < L - 1:
                    # One fused MXU push: [h @ W_hh^l | h @ W_ih^{l+1}].
                    y = jnp.dot(h_new, rhs[l],
                                preferred_element_type=jnp.float32)  # (B, 2H)
                    rec[l] = y[:, :H]
                    inproj[l + 1][t] = y[:, H:] + bias_next[l]
                else:
                    last_hs[t] = h_new
                    if t < T - 1:
                        rec[l] = jnp.dot(h_new, w_hh_last,
                                         preferred_element_type=jnp.float32)

        # ---- Epilogue: single lane-dense stores ---------------------------
        # Batch-major row order (b*T + t), matching r_out.view(-1, hidden)
        # on a batch_first tensor.
        r = jnp.stack(last_hs, axis=1).reshape(B * T, H)
        out_ref[...] = (jnp.dot(r, fc_w_ref[...],
                                preferred_element_type=jnp.float32)
                        + fc_b_ref[...])
        hn_ref[...] = jnp.stack(h, axis=0)          # one (L, B, H) store

    return kernel


def _full_block(arr):
    ndim = arr.ndim
    return pl.BlockSpec(arr.shape, lambda: (0,) * ndim)


# ----------------------------------------------------------------------------
# Wrapper
# ----------------------------------------------------------------------------
def rnn_forward(params, x, hidden):
    """x: (batch, seq, input_size), hidden: (n_layers, batch, hidden_dim).
    Returns (output (batch*seq, output_size), h_n (n_layers, batch, hidden_dim))."""
    batch, seq, input_size = x.shape
    n_layers, _, hidden_dim = hidden.shape
    fc_w_t = params["fc_w_t"]
    fc_b = params["fc_b"]
    output_size = fc_w_t.shape[1]
    out_pad = max(128, ((output_size + 127) // 128) * 128)   # lane-dense store

    # Time-major flattened input: the per-step pre-activation slice becomes a
    # static sublane-contiguous slice inside the kernel (XLA transpose here
    # is tiny and outside the serial recurrence).
    x_tm = jnp.transpose(x, (1, 0, 2)).reshape(seq * batch, input_size)

    layers = params["layers"]
    args = [x_tm, hidden, layers[0][0], layers[0][2] + layers[0][3]]
    for l in range(n_layers - 1):
        rhs = jnp.concatenate([layers[l][1], layers[l + 1][0]], axis=1)  # (H, 2H)
        args += [rhs, layers[l + 1][2] + layers[l + 1][3]]
    args += [layers[-1][1]]                                               # w_hh last
    fc_w_pad = jnp.zeros((hidden_dim, out_pad), jnp.float32).at[:, :output_size].set(fc_w_t)
    fc_b_pad = jnp.zeros((1, out_pad), jnp.float32).at[:, :output_size].set(fc_b)
    args += [fc_w_pad, fc_b_pad]

    in_specs = [_full_block(a) for a in args]
    out_shape = (jax.ShapeDtypeStruct((batch * seq, out_pad), jnp.float32),
                 jax.ShapeDtypeStruct((n_layers, batch, hidden_dim), jnp.float32))
    out_specs = (pl.BlockSpec((batch * seq, out_pad), lambda: (0, 0)),
                 pl.BlockSpec((n_layers, batch, hidden_dim), lambda: (0, 0, 0)))

    # TODO(synk): for large batch add a batch-tiled grid with
    # dimension_semantics=("parallel",) (v7x 2-TC) and bf16 weights; for large
    # seq/hidden switch to a seq-blocked grid + vmem_limit_bytes guard (v7x
    # has only 64 MiB VMEM).
    out, h_n = pl.pallas_call(
        _make_fused_rnn_kernel(seq, n_layers),
        out_shape=out_shape,
        in_specs=in_specs,
        out_specs=out_specs,
    )(*args)
    return out[:, :output_size], h_n


# ----------------------------------------------------------------------------
# Parameter init (matches torch.nn.RNN / Linear shapes; weights stored transposed)
# ----------------------------------------------------------------------------
def init_params(key, input_size, output_size, hidden_dim, n_layers):
    params = {"layers": []}
    bound = 1.0 / math.sqrt(hidden_dim)
    keys = iter(jax.random.split(key, 4 * n_layers + 2))
    for l in range(n_layers):
        in_dim = input_size if l == 0 else hidden_dim
        w_ih_t = jax.random.uniform(next(keys), (in_dim, hidden_dim),
                                    jnp.float32, -bound, bound)
        w_hh_t = jax.random.uniform(next(keys), (hidden_dim, hidden_dim),
                                    jnp.float32, -bound, bound)
        b_ih = jax.random.uniform(next(keys), (1, hidden_dim),
                                  jnp.float32, -bound, bound)
        b_hh = jax.random.uniform(next(keys), (1, hidden_dim),
                                  jnp.float32, -bound, bound)
        params["layers"].append((w_ih_t, w_hh_t, b_ih, b_hh))
    fc_bound = 1.0 / math.sqrt(hidden_dim)
    params["fc_w_t"] = jax.random.uniform(next(keys), (hidden_dim, output_size),
                                          jnp.float32, -fc_bound, fc_bound)
    params["fc_b"] = jax.random.uniform(next(keys), (1, output_size),
                                        jnp.float32, -fc_bound, fc_bound)
    return params


# ----------------------------------------------------------------------------
# Pure-JAX reference (correctness check)
# ----------------------------------------------------------------------------
def rnn_forward_ref(params, x, hidden):
    batch, seq, _ = x.shape
    hidden_dim = hidden.shape[-1]
    layer_in = x
    new_hidden = []
    for l, (w_ih_t, w_hh_t, b_ih, b_hh) in enumerate(params["layers"]):
        h = hidden[l]
        outs = []
        for t in range(seq):
            h = jax.nn.relu(layer_in[:, t, :] @ w_ih_t + h @ w_hh_t + b_ih + b_hh)
            outs.append(h)
        layer_in = jnp.stack(outs, axis=1)
        new_hidden.append(h)
    r_out = layer_in.reshape(batch * seq, hidden_dim)
    output = r_out @ params["fc_w_t"] + params["fc_b"]
    return output, jnp.stack(new_hidden, axis=0)


# ----------------------------------------------------------------------------
if __name__ == "__main__":
    batch, seq = 2, 8
    input_size, hidden_dim, output_size, n_layers = 4, 32, 4, 2

    key = jax.random.PRNGKey(0)
    k_param, k_x, k_h = jax.random.split(key, 3)
    params = init_params(k_param, input_size, output_size, hidden_dim, n_layers)

    x = jax.random.normal(k_x, (batch, seq, input_size), jnp.float32)
    hidden = jax.random.normal(k_h, (n_layers, batch, hidden_dim), jnp.float32)

    fwd = jax.jit(rnn_forward)
    output, h_n = fwd(params, x, hidden)
    output = jax.block_until_ready(output)
    h_n = jax.block_until_ready(h_n)

    out_ref, h_ref = rnn_forward_ref(params, x, hidden)
    assert output.shape == (batch * seq, output_size)
    assert h_n.shape == (n_layers, batch, hidden_dim)
    assert jnp.allclose(output, out_ref, atol=1e-4, rtol=1e-4)
    assert jnp.allclose(h_n, h_ref, atol=1e-4, rtol=1e-4)

    print("KERNEL_OK")
</pallas_src>

<mosaic_0001>
module attributes {stable_mosaic.version = 11 : i64} {
  func.func @kernel(%arg0: memref<16x4xf32, #tpu.memory_space<vmem>>, %arg1: memref<2x2x32xf32, #tpu.memory_space<vmem>>, %arg2: memref<4x32xf32, #tpu.memory_space<vmem>>, %arg3: memref<1x32xf32, #tpu.memory_space<vmem>>, %arg4: memref<32x64xf32, #tpu.memory_space<vmem>>, %arg5: memref<1x32xf32, #tpu.memory_space<vmem>>, %arg6: memref<32x32xf32, #tpu.memory_space<vmem>>, %arg7: memref<32x128xf32, #tpu.memory_space<vmem>>, %arg8: memref<1x128xf32, #tpu.memory_space<vmem>>, %arg9: memref<16x128xf32, #tpu.memory_space<vmem>>, %arg10: memref<2x2x32xf32, #tpu.memory_space<vmem>>) attributes {dimension_semantics = [], scalar_prefetch = 0 : i64, scratch_operands = 0 : i64, tpu.core_type = #tpu.core_type<tc>} {
    %c0 = arith.constant 0 : index
    %c0_0 = arith.constant 0 : index
    %0 = vector.load %arg0[%c0, %c0_0] : memref<16x4xf32, #tpu.memory_space<vmem>>, vector<16x4xf32>
    %c0_1 = arith.constant 0 : index
    %c0_2 = arith.constant 0 : index
    %1 = vector.load %arg2[%c0_1, %c0_2] : memref<4x32xf32, #tpu.memory_space<vmem>>, vector<4x32xf32>
    %cst = arith.constant dense<0.000000e+00> : vector<16x32xf32>
    %2 = tpu.matmul %0, %1, %cst {dimension_numbers = #tpu.dot_dimension_numbers<[1], [0], [0], [1], [0, 0, 1, 1], [], []>} : vector<16x4xf32>, vector<4x32xf32>, vector<16x32xf32> -> vector<16x32xf32>
    %c0_3 = arith.constant 0 : index
    %c0_4 = arith.constant 0 : index
    %3 = vector.load %arg3[%c0_3, %c0_4] : memref<1x32xf32, #tpu.memory_space<vmem>>, vector<1x32xf32>
    %4 = vector.broadcast %3 : vector<1x32xf32> to vector<16x32xf32>
    %5 = arith.addf %2, %4 : vector<16x32xf32>
    %c0_5 = arith.constant 0 : index
    %c0_6 = arith.constant 0 : index
    %6 = vector.load %arg4[%c0_5, %c0_6] : memref<32x64xf32, #tpu.memory_space<vmem>>, vector<32x64xf32>
    %c0_7 = arith.constant 0 : index
    %c0_8 = arith.constant 0 : index
    %7 = vector.load %arg5[%c0_7, %c0_8] : memref<1x32xf32, #tpu.memory_space<vmem>>, vector<1x32xf32>
    %8 = vector.shape_cast %7 : vector<1x32xf32> to vector<1x32xf32>
    %9 = vector.broadcast %8 : vector<1x32xf32> to vector<2x32xf32>
    %c0_9 = arith.constant 0 : index
    %c0_10 = arith.constant 0 : index
    %10 = vector.load %arg6[%c0_9, %c0_10] : memref<32x32xf32, #tpu.memory_space<vmem>>, vector<32x32xf32>
    %c0_11 = arith.constant 0 : index
    %c0_12 = arith.constant 0 : index
    %c0_13 = arith.constant 0 : index
    %11 = vector.load %arg1[%c0_11, %c0_12, %c0_13] : memref<2x2x32xf32, #tpu.memory_space<vmem>>, vector<1x2x32xf32>
    %12 = vector.shape_cast %11 : vector<1x2x32xf32> to vector<2x32xf32>
    %c1 = arith.constant 1 : index
    %c0_14 = arith.constant 0 : index
    %c0_15 = arith.constant 0 : index
    %13 = vector.load %arg1[%c1, %c0_14, %c0_15] : memref<2x2x32xf32, #tpu.memory_space<vmem>>, vector<1x2x32xf32>
    %14 = vector.shape_cast %13 : vector<1x2x32xf32> to vector<2x32xf32>
    %cst_16 = arith.constant dense<0.000000e+00> : vector<2x64xf32>
    %15 = tpu.matmul %12, %6, %cst_16 {dimension_numbers = #tpu.dot_dimension_numbers<[1], [0], [0], [1], [0, 0, 1, 1], [], []>} : vector<2x32xf32>, vector<32x64xf32>, vector<2x64xf32> -> vector<2x64xf32>
    %16 = vector.extract_strided_slice %15 {offsets = [0, 0], sizes = [2, 32], strides = [1, 1]} : vector<2x64xf32> to vector<2x32xf32>
    %cst_17 = arith.constant dense<0.000000e+00> : vector<2x32xf32>
    %17 = tpu.matmul %14, %10, %cst_17 {dimension_numbers = #tpu.dot_dimension_numbers<[1], [0], [0], [1], [0, 0, 1, 1], [], []>} : vector<2x32xf32>, vector<32x32xf32>, vector<2x32xf32> -> vector<2x32xf32>
    %18 = vector.extract_strided_slice %5 {offsets = [0, 0], sizes = [2, 32], strides = [1, 1]} : vector<16x32xf32> to vector<2x32xf32>
    %19 = vector.extract_strided_slice %5 {offsets = [2, 0], sizes = [2, 32], strides = [1, 1]} : vector<16x32xf32> to vector<2x32xf32>
    %20 = vector.extract_strided_slice %5 {offsets = [4, 0], sizes = [2, 32], strides = [1, 1]} : vector<16x32xf32> to vector<2x32xf32>
    %21 = vector.extract_strided_slice %5 {offsets = [6, 0], sizes = [2, 32], strides = [1, 1]} : vector<16x32xf32> to vector<2x32xf32>
    %22 = vector.extract_strided_slice %5 {offsets = [8, 0], sizes = [2, 32], strides = [1, 1]} : vector<16x32xf32> to vector<2x32xf32>
    %23 = vector.extract_strided_slice %5 {offsets = [10, 0], sizes = [2, 32], strides = [1, 1]} : vector<16x32xf32> to vector<2x32xf32>
    %24 = vector.extract_strided_slice %5 {offsets = [12, 0], sizes = [2, 32], strides = [1, 1]} : vector<16x32xf32> to vector<2x32xf32>
    %25 = vector.extract_strided_slice %5 {offsets = [14, 0], sizes = [2, 32], strides = [1, 1]} : vector<16x32xf32> to vector<2x32xf32>
    %26 = arith.addf %18, %16 : vector<2x32xf32>
    %cst_18 = arith.constant 0.000000e+00 : f32
    %27 = vector.broadcast %cst_18 : f32 to vector<2x32xf32>
    %28 = arith.maximumf %26, %27 : vector<2x32xf32>
    %cst_19 = arith.constant dense<0.000000e+00> : vector<2x64xf32>
    %29 = tpu.matmul %28, %6, %cst_19 {dimension_numbers = #tpu.dot_dimension_numbers<[1], [0], [0], [1], [0, 0, 1, 1], [], []>} : vector<2x32xf32>, vector<32x64xf32>, vector<2x64xf32> -> vector<2x64xf32>
    %30 = vector.extract_strided_slice %29 {offsets = [0, 0], sizes = [2, 32], strides = [1, 1]} : vector<2x64xf32> to vector<2x32xf32>
    %31 = vector.extract_strided_slice %29 {offsets = [0, 32], sizes = [2, 32], strides = [1, 1]} : vector<2x64xf32> to vector<2x32xf32>
    %32 = arith.addf %31, %9 : vector<2x32xf32>
    %33 = arith.addf %19, %30 : vector<2x32xf32>
    %cst_20 = arith.constant 0.000000e+00 : f32
    %34 = vector.broadcast %cst_20 : f32 to vector<2x32xf32>
    %35 = arith.maximumf %33, %34 : vector<2x32xf32>
    %cst_21 = arith.constant dense<0.000000e+00> : vector<2x64xf32>
    %36 = tpu.matmul %35, %6, %cst_21 {dimension_numbers = #tpu.dot_dimension_numbers<[1], [0], [0], [1], [0, 0, 1, 1], [], []>} : vector<2x32xf32>, vector<32x64xf32>, vector<2x64xf32> -> vector<2x64xf32>
    %37 = vector.extract_strided_slice %36 {offsets = [0, 0], sizes = [2, 32], strides = [1, 1]} : vector<2x64xf32> to vector<2x32xf32>
    %38 = vector.extract_strided_slice %36 {offsets = [0, 32], sizes = [2, 32], strides = [1, 1]} : vector<2x64xf32> to vector<2x32xf32>
    %39 = arith.addf %38, %9 : vector<2x32xf32>
    %40 = arith.addf %32, %17 : vector<2x32xf32>
    %cst_22 = arith.constant 0.000000e+00 : f32
    %41 = vector.broadcast %cst_22 : f32 to vector<2x32xf32>
    %42 = arith.maximumf %40, %41 : vector<2x32xf32>
    %cst_23 = arith.constant dense<0.000000e+00> : vector<2x32xf32>
    %43 = tpu.matmul %42, %10, %cst_23 {dimension_numbers = #tpu.dot_dimension_numbers<[1], [0], [0], [1], [0, 0, 1, 1], [], []>} : vector<2x32xf32>, vector<32x32xf32>, vector<2x32xf32> -> vector<2x32xf32>
    %44 = arith.addf %20, %37 : vector<2x32xf32>
    %cst_24 = arith.constant 0.000000e+00 : f32
    %45 = vector.broadcast %cst_24 : f32 to vector<2x32xf32>
    %46 = arith.maximumf %44, %45 : vector<2x32xf32>
    %cst_25 = arith.constant dense<0.000000e+00> : vector<2x64xf32>
    %47 = tpu.matmul %46, %6, %cst_25 {dimension_numbers = #tpu.dot_dimension_numbers<[1], [0], [0], [1], [0, 0, 1, 1], [], []>} : vector<2x32xf32>, vector<32x64xf32>, vector<2x64xf32> -> vector<2x64xf32>
    %48 = vector.extract_strided_slice %47 {offsets = [0, 0], sizes = [2, 32], strides = [1, 1]} : vector<2x64xf32> to vector<2x32xf32>
    %49 = vector.extract_strided_slice %47 {offsets = [0, 32], sizes = [2, 32], strides = [1, 1]} : vector<2x64xf32> to vector<2x32xf32>
    %50 = arith.addf %49, %9 : vector<2x32xf32>
    %51 = arith.addf %39, %43 : vector<2x32xf32>
    %cst_26 = arith.constant 0.000000e+00 : f32
    %52 = vector.broadcast %cst_26 : f32 to vector<2x32xf32>
    %53 = arith.maximumf %51, %52 : vector<2x32xf32>
    %cst_27 = arith.constant dense<0.000000e+00> : vector<2x32xf32>
    %54 = tpu.matmul %53, %10, %cst_27 {dimension_numbers = #tpu.dot_dimension_numbers<[1], [0], [0], [1], [0, 0, 1, 1], [], []>} : vector<2x32xf32>, vector<32x32xf32>, vector<2x32xf32> -> vector<2x32xf32>
    %55 = arith.addf %21, %48 : vector<2x32xf32>
    %cst_28 = arith.constant 0.000000e+00 : f32
    %56 = vector.broadcast %cst_28 : f32 to vector<2x32xf32>
    %57 = arith.maximumf %55, %56 : vector<2x32xf32>
    %cst_29 = arith.constant dense<0.000000e+00> : vector<2x64xf32>
    %58 = tpu.matmul %57, %6, %cst_29 {dimension_numbers = #tpu.dot_dimension_numbers<[1], [0], [0], [1], [0, 0, 1, 1], [], []>} : vector<2x32xf32>, vector<32x64xf32>, vector<2x64xf32> -> vector<2x64xf32>
    %59 = vector.extract_strided_slice %58 {offsets = [0, 0], sizes = [2, 32], strides = [1, 1]} : vector<2x64xf32> to vector<2x32xf32>
    %60 = vector.extract_strided_slice %58 {offsets = [0, 32], sizes = [2, 32], strides = [1, 1]} : vector<2x64xf32> to vector<2x32xf32>
    %61 = arith.addf %60, %9 : vector<2x32xf32>
    %62 = arith.addf %50, %54 : vector<2x32xf32>
    %cst_30 = arith.constant 0.000000e+00 : f32
    %63 = vector.broadcast %cst_30 : f32 to vector<2x32xf32>
    %64 = arith.maximumf %62, %63 : vector<2x32xf32>
    %cst_31 = arith.constant dense<0.000000e+00> : vector<2x32xf32>
    %65 = tpu.matmul %64, %10, %cst_31 {dimension_numbers = #tpu.dot_dimension_numbers<[1], [0], [0], [1], [0, 0, 1, 1], [], []>} : vector<2x32xf32>, vector<32x32xf32>, vector<2x32xf32> -> vector<2x32xf32>
    %66 = arith.addf %22, %59 : vector<2x32xf32>
    %cst_32 = arith.constant 0.000000e+00 : f32
    %67 = vector.broadcast %cst_32 : f32 to vector<2x32xf32>
    %68 = arith.maximumf %66, %67 : vector<2x32xf32>
    %cst_33 = arith.constant dense<0.000000e+00> : vector<2x64xf32>
    %69 = tpu.matmul %68, %6, %cst_33 {dimension_numbers = #tpu.dot_dimension_numbers<[1], [0], [0], [1], [0, 0, 1, 1], [], []>} : vector<2x32xf32>, vector<32x64xf32>, vector<2x64xf32> -> vector<2x64xf32>
    %70 = vector.extract_strided_slice %69 {offsets = [0, 0], sizes = [2, 32], strides = [1, 1]} : vector<2x64xf32> to vector<2x32xf32>
    %71 = vector.extract_strided_slice %69 {offsets = [0, 32], sizes = [2, 32], strides = [1, 1]} : vector<2x64xf32> to vector<2x32xf32>
    %72 = arith.addf %71, %9 : vector<2x32xf32>
    %73 = arith.addf %61, %65 : vector<2x32xf32>
    %cst_34 = arith.constant 0.000000e+00 : f32
    %74 = vector.broadcast %cst_34 : f32 to vector<2x32xf32>
    %75 = arith.maximumf %73, %74 : vector<2x32xf32>
    %cst_35 = arith.constant dense<0.000000e+00> : vector<2x32xf32>
    %76 = tpu.matmul %75, %10, %cst_35 {dimension_numbers = #tpu.dot_dimension_numbers<[1], [0], [0], [1], [0, 0, 1, 1], [], []>} : vector<2x32xf32>, vector<32x32xf32>, vector<2x32xf32> -> vector<2x32xf32>
    %77 = arith.addf %23, %70 : vector<2x32xf32>
    %cst_36 = arith.constant 0.000000e+00 : f32
    %78 = vector.broadcast %cst_36 : f32 to vector<2x32xf32>
    %79 = arith.maximumf %77, %78 : vector<2x32xf32>
    %cst_37 = arith.constant dense<0.000000e+00> : vector<2x64xf32>
    %80 = tpu.matmul %79, %6, %cst_37 {dimension_numbers = #tpu.dot_dimension_numbers<[1], [0], [0], [1], [0, 0, 1, 1], [], []>} : vector<2x32xf32>, vector<32x64xf32>, vector<2x64xf32> -> vector<2x64xf32>
    %81 = vector.extract_strided_slice %80 {offsets = [0, 0], sizes = [2, 32], strides = [1, 1]} : vector<2x64xf32> to vector<2x32xf32>
    %82 = vector.extract_strided_slice %80 {offsets = [0, 32], sizes = [2, 32], strides = [1, 1]} : vector<2x64xf32> to vector<2x32xf32>
    %83 = arith.addf %82, %9 : vector<2x32xf32>
    %84 = arith.addf %72, %76 : vector<2x32xf32>
    %cst_38 = arith.constant 0.000000e+00 : f32
    %85 = vector.broadcast %cst_38 : f32 to vector<2x32xf32>
    %86 = arith.maximumf %84, %85 : vector<2x32xf32>
    %cst_39 = arith.constant dense<0.000000e+00> : vector<2x32xf32>
    %87 = tpu.matmul %86, %10, %cst_39 {dimension_numbers = #tpu.dot_dimension_numbers<[1], [0], [0], [1], [0, 0, 1, 1], [], []>} : vector<2x32xf32>, vector<32x32xf32>, vector<2x32xf32> -> vector<2x32xf32>
    %88 = arith.addf %24, %81 : vector<2x32xf32>
    %cst_40 = arith.constant 0.000000e+00 : f32
    %89 = vector.broadcast %cst_40 : f32 to vector<2x32xf32>
    %90 = arith.maximumf %88, %89 : vector<2x32xf32>
    %cst_41 = arith.constant dense<0.000000e+00> : vector<2x64xf32>
    %91 = tpu.matmul %90, %6, %cst_41 {dimension_numbers = #tpu.dot_dimension_numbers<[1], [0], [0], [1], [0, 0, 1, 1], [], []>} : vector<2x32xf32>, vector<32x64xf32>, vector<2x64xf32> -> vector<2x64xf32>
    %92 = vector.extract_strided_slice %91 {offsets = [0, 0], sizes = [2, 32], strides = [1, 1]} : vector<2x64xf32> to vector<2x32xf32>
    %93 = vector.extract_strided_slice %91 {offsets = [0, 32], sizes = [2, 32], strides = [1, 1]} : vector<2x64xf32> to vector<2x32xf32>
    %94 = arith.addf %93, %9 : vector<2x32xf32>
    %95 = arith.addf %83, %87 : vector<2x32xf32>
    %cst_42 = arith.constant 0.000000e+00 : f32
    %96 = vector.broadcast %cst_42 : f32 to vector<2x32xf32>
    %97 = arith.maximumf %95, %96 : vector<2x32xf32>
    %cst_43 = arith.constant dense<0.000000e+00> : vector<2x32xf32>
    %98 = tpu.matmul %97, %10, %cst_43 {dimension_numbers = #tpu.dot_dimension_numbers<[1], [0], [0], [1], [0, 0, 1, 1], [], []>} : vector<2x32xf32>, vector<32x32xf32>, vector<2x32xf32> -> vector<2x32xf32>
    %99 = arith.addf %25, %92 : vector<2x32xf32>
    %cst_44 = arith.constant 0.000000e+00 : f32
    %100 = vector.broadcast %cst_44 : f32 to vector<2x32xf32>
    %101 = arith.maximumf %99, %100 : vector<2x32xf32>
    %cst_45 = arith.constant dense<0.000000e+00> : vector<2x64xf32>
    %102 = tpu.matmul %101, %6, %cst_45 {dimension_numbers = #tpu.dot_dimension_numbers<[1], [0], [0], [1], [0, 0, 1, 1], [], []>} : vector<2x32xf32>, vector<32x64xf32>, vector<2x64xf32> -> vector<2x64xf32>
    %103 = vector.extract_strided_slice %102 {offsets = [0, 32], sizes = [2, 32], strides = [1, 1]} : vector<2x64xf32> to vector<2x32xf32>
    %104 = arith.addf %103, %9 : vector<2x32xf32>
    %105 = arith.addf %94, %98 : vector<2x32xf32>
    %cst_46 = arith.constant 0.000000e+00 : f32
    %106 = vector.broadcast %cst_46 : f32 to vector<2x32xf32>
    %107 = arith.maximumf %105, %106 : vector<2x32xf32>
    %cst_47 = arith.constant dense<0.000000e+00> : vector<2x32xf32>
    %108 = tpu.matmul %107, %10, %cst_47 {dimension_numbers = #tpu.dot_dimension_numbers<[1], [0], [0], [1], [0, 0, 1, 1], [], []>} : vector<2x32xf32>, vector<32x32xf32>, vector<2x32xf32> -> vector<2x32xf32>
    %109 = arith.addf %104, %108 : vector<2x32xf32>
    %cst_48 = arith.constant 0.000000e+00 : f32
    %110 = vector.broadcast %cst_48 : f32 to vector<2x32xf32>
    %111 = arith.maximumf %109, %110 : vector<2x32xf32>
    %112 = vector.shape_cast %42 : vector<2x32xf32> to vector<2x1x32xf32>
    %113 = vector.shape_cast %53 : vector<2x32xf32> to vector<2x1x32xf32>
    %114 = vector.shape_cast %64 : vector<2x32xf32> to vector<2x1x32xf32>
    %115 = vector.shape_cast %75 : vector<2x32xf32> to vector<2x1x32xf32>
    %116 = vector.shape_cast %86 : vector<2x32xf32> to vector<2x1x32xf32>
    %117 = vector.shape_cast %97 : vector<2x32xf32> to vector<2x1x32xf32>
    %118 = vector.shape_cast %107 : vector<2x32xf32> to vector<2x1x32xf32>
    %119 = vector.shape_cast %111 : vector<2x32xf32> to vector<2x1x32xf32>
    %120 = tpu.concatenate %112, %113, %114, %115, %116, %117, %118, %119 in 1 : vector<2x1x32xf32>, vector<2x1x32xf32>, vector<2x1x32xf32>, vector<2x1x32xf32>, vector<2x1x32xf32>, vector<2x1x32xf32>, vector<2x1x32xf32>, vector<2x1x32xf32> -> vector<2x8x32xf32>
    %121 = vector.shape_cast %120 : vector<2x8x32xf32> to vector<16x32xf32>
    %c0_49 = arith.constant 0 : index
    %c0_50 = arith.constant 0 : index
    %122 = vector.load %arg7[%c0_49, %c0_50] : memref<32x128xf32, #tpu.memory_space<vmem>>, vector<32x128xf32>
    %cst_51 = arith.constant dense<0.000000e+00> : vector<16x128xf32>
    %123 = tpu.matmul %121, %122, %cst_51 {dimension_numbers = #tpu.dot_dimension_numbers<[1], [0], [0], [1], [0, 0, 1, 1], [], []>} : vector<16x32xf32>, vector<32x128xf32>, vector<16x128xf32> -> vector<16x128xf32>
    %c0_52 = arith.constant 0 : index
    %c0_53 = arith.constant 0 : index
    %124 = vector.load %arg8[%c0_52, %c0_53] : memref<1x128xf32, #tpu.memory_space<vmem>>, vector<1x128xf32>
    %125 = vector.broadcast %124 : vector<1x128xf32> to vector<16x128xf32>
    %126 = arith.addf %123, %125 : vector<16x128xf32>
    %c0_54 = arith.constant 0 : index
    %c0_55 = arith.constant 0 : index
    %127 = vector.load %arg9[%c0_54, %c0_55] : memref<16x128xf32, #tpu.memory_space<vmem>>, vector<16x128xf32>
    tpu.vector_store %arg9[%c0_54, %c0_55], %126 {strides = array<i32>} : memref<16x128xf32, #tpu.memory_space<vmem>>, vector<16x128xf32>,
    %128 = vector.shape_cast %101 : vector<2x32xf32> to vector<1x2x32xf32>
    %129 = vector.shape_cast %111 : vector<2x32xf32> to vector<1x2x32xf32>
    %130 = tpu.concatenate %128, %129 in 0 : vector<1x2x32xf32>, vector<1x2x32xf32> -> vector<2x2x32xf32>
    %c0_56 = arith.constant 0 : index
    %c0_57 = arith.constant 0 : index
    %c0_58 = arith.constant 0 : index
    %131 = vector.load %arg10[%c0_56, %c0_57, %c0_58] : memref<2x2x32xf32, #tpu.memory_space<vmem>>, vector<2x2x32xf32>
    tpu.vector_store %arg10[%c0_56, %c0_57, %c0_58], %130 {strides = array<i32>} : memref<2x2x32xf32, #tpu.memory_space<vmem>>, vector<2x2x32xf32>,
    return
  }
}

</mosaic_0001>

<llo_original>
// kernel: rnn_forward.1
$region0: #{rnn_forward.1}
  #allocation0 [shape = 'u32[]', space=smem, size = 0x4, offset = 0x4, fixed_abs, tag = 'smem constant byte address 0x4 - core index']
  #allocation1 [shape = 'u32[144,128]{1,0:T(1,128)}', space=vmem, size = 0x12000, scoped, tag = 'internal scratch']
  %s0 = inlined_call_operand.vmem [shape: f32[16,4], index: 0, kind: input, shape index: {}]
  %s1 = inlined_call_operand.vmem [shape: f32[2,2,32], index: 1, kind: input, shape index: {}]
  %s2 = inlined_call_operand.vmem [shape: f32[4,32], index: 2, kind: input, shape index: {}]
  %s3 = inlined_call_operand.vmem [shape: f32[1,32], index: 3, kind: input, shape index: {}]
  %s4 = inlined_call_operand.vmem [shape: f32[32,64], index: 4, kind: input, shape index: {}]
  %s5 = inlined_call_operand.vmem [shape: f32[1,32], index: 5, kind: input, shape index: {}]
  %s6 = inlined_call_operand.vmem [shape: f32[32,32], index: 6, kind: input, shape index: {}]
  %s7 = inlined_call_operand.vmem [shape: f32[32,128], index: 7, kind: input, shape index: {}]
  %s8 = inlined_call_operand.vmem [shape: f32[1,128], index: 8, kind: input, shape index: {}]
  %s9 = inlined_call_operand.vmem [shape: f32[16,128], index: 9, kind: output, shape index: {0}]
  %s10 = inlined_call_operand.hbm [shape: f32[2,2,32], index: 10, kind: output, shape index: {1}]
  %11 = xla_tuple %s9, %s10
  %s12 = sld [smem:[#allocation0]]
  $region54: #{rnn_forward.1} parent=0
    _
  %s14 = ssub.s32 1, %s12
  %s15 = scalar_select 0, %s14, %s12
  $region1: #{rnn_forward.1} parent=0
    #allocation2 [shape = 'u8[2048]{0}', space=vmem, size = 0x800, scoped, tag = 'output window, operand 1, single buffered']
    #allocation3 [shape = 's32[1]{0}', space=sflag, size = 0x4, scoped, tag = 'scoped memory for rnn_forward.1']
    %16 = vsyncpa [#allocation3], 0
    // Predicated region
    $region2: #{rnn_forward.1} parent=1 // pred_check
      _
    $region3: #{rnn_forward.1} parent=1 // pred_check_branch
      %18 = sbr.rel (0) target = $region5
    $region4: #{rnn_forward.1} parent=1 // pred_region
      _
    $region5: #{rnn_forward.1} parent=1 // pred_fallthru
      _
    // Predicated region
    $region6: #{rnn_forward.1} parent=1 // pred_check
      _
    $region7: #{rnn_forward.1} parent=1 // pred_check_branch
      %20 = sbr.rel (0) target = $region9
    $region8: #{rnn_forward.1} parent=1 // pred_region
      _
    $region9: #{rnn_forward.1} parent=1 // pred_fallthru
      _
    // Predicated region
    $region10: #{rnn_forward.1} parent=1 // pred_check
      _
    $region11: #{rnn_forward.1} parent=1 // pred_check_branch
      %22 = sbr.rel (0) target = $region13
    $region12: #{rnn_forward.1} parent=1 // pred_region
      _
    $region13: #{rnn_forward.1} parent=1 // pred_fallthru
      _
    // Predicated region
    $region14: #{rnn_forward.1} parent=1 // pred_check
      _
    $region15: #{rnn_forward.1} parent=1 // pred_check_branch
      %24 = sbr.rel (0) target = $region17
    $region16: #{rnn_forward.1} parent=1 // pred_region
      _
    $region17: #{rnn_forward.1} parent=1 // pred_fallthru
      _
    // Predicated region
    $region18: #{rnn_forward.1} parent=1 // pred_check
      _
    $region19: #{rnn_forward.1} parent=1 // pred_check_branch
      %26 = sbr.rel (0) target = $region21
    $region20: #{rnn_forward.1} parent=1 // pred_region
      _
    $region21: #{rnn_forward.1} parent=1 // pred_fallthru
      _
    // Predicated region
    $region22: #{rnn_forward.1} parent=1 // pred_check
      _
    $region23: #{rnn_forward.1} parent=1 // pred_check_branch
      %28 = sbr.rel (0) target = $region25
    $region24: #{rnn_forward.1} parent=1 // pred_region
      _
    $region25: #{rnn_forward.1} parent=1 // pred_fallthru
      _
    // Predicated region
    $region26: #{rnn_forward.1} parent=1 // pred_check
      _
    $region27: #{rnn_forward.1} parent=1 // pred_check_branch
      %30 = sbr.rel (0) target = $region29
    $region28: #{rnn_forward.1} parent=1 // pred_region
      _
    $region29: #{rnn_forward.1} parent=1 // pred_fallthru
      _
    // Predicated region
    $region30: #{rnn_forward.1} parent=1 // pred_check
      _
    $region31: #{rnn_forward.1} parent=1 // pred_check_branch
      %32 = sbr.rel (0) target = $region33
    $region32: #{rnn_forward.1} parent=1 // pred_region
      _
    $region33: #{rnn_forward.1} parent=1 // pred_fallthru
      _
    // Predicated region
    $region34: #{rnn_forward.1} parent=1 // pred_check
      _
    $region35: #{rnn_forward.1} parent=1 // pred_check_branch
      %34 = sbr.rel (0) target = $region37
    $region36: #{rnn_forward.1} parent=1 // pred_region
      _
    $region37: #{rnn_forward.1} parent=1 // pred_fallthru
      _
    %v35 = vld [vmem:[%s0] sm:$0xff]
    %v36 = vld [vmem:[%s0 + $0x8] sm:$0xff]
    %v37 = vld [vmem:[%s2] sm:$0xf]
    %v38 = vld [vmem:[%s3] sm:$0x1]
    %v40 = vlaneseq
    %v41 = vshrl.u32 %v40, 7
    %v42 = vsub.s32 0, %v41
    %v43 = vrot.slane %v38, %v42
    %vm45 = vcmask 31744
    %v47 = vsel %vm45, %v35, 0
    %v50 = vsel %vm45, %v36, 0
    %vm52 = vcmask 1043456
    %v54 = vsel %vm52, %v37, 0
    %56 = vmatprep.subr.mxu0 0.0
    %57 = vmatpush1.msra.mxu0 %v54
    %58 = vmatprep.subr.mxu0 0.0
    %59 = vmatpush1.msra.mxu0 0.0
    %60 = vmatprep.subr.mxu0 0.0
    %61 = vmatpush1.msra.mxu0 0.0
    %62 = vmatprep.subr.mxu0 0.0
    %63 = vmatpush1.msra.mxu0 0.0
    %64 = vmatprep.subr.mxu0 0.0
    %65 = vmatpush1.msra.mxu0 0.0
    %66 = vmatprep.subr.mxu0 0.0
    %67 = vmatpush1.msra.mxu0 0.0
    %68 = vmatprep.subr.mxu0 0.0
    %69 = vmatpush1.msra.mxu0 0.0
    %70 = vmatprep.subr.mxu0 0.0
    %71 = vmatpush1.msra.mxu0 0.0
    %72 = vmatprep.subr.mxu0 0.0
    %73 = vmatpush1.msra.mxu0 0.0
    %74 = vmatprep.subr.mxu0 0.0
    %75 = vmatpush1.msra.mxu0 0.0
    %76 = vmatprep.subr.mxu0 0.0
    %77 = vmatpush1.msra.mxu0 0.0
    %78 = vmatprep.subr.mxu0 0.0
    %79 = vmatpush1.msra.mxu0 0.0
    %80 = vmatprep.subr.mxu0 0.0
    %81 = vmatpush1.msra.mxu0 0.0
    %82 = vmatprep.subr.mxu0 0.0
    %83 = vmatpush1.msra.mxu0 0.0
    %84 = vmatprep.subr.mxu0 0.0
    %85 = vmatpush1.msra.mxu0 0.0
    %86 = vmatprep.subr.mxu0 0.0
    %87 = vmatpush1.msra.mxu0 0.0
    %88 = vmatprep.subr.mxu0 0.0
    %89 = vmatpush1.msra.mxu0 0.0
    %90 = vmatprep.subr.mxu0 0.0
    %91 = vmatpush1.msra.mxu0 0.0
    %92 = vmatprep.subr.mxu0 0.0
    %93 = vmatpush1.msra.mxu0 0.0
    %94 = vmatprep.subr.mxu0 0.0
    %95 = vmatpush1.msra.mxu0 0.0
    %96 = vmatprep.subr.mxu0 0.0
    %97 = vmatpush1.msra.mxu0 0.0
    %98 = vmatprep.subr.mxu0 0.0
    %99 = vmatpush1.msra.mxu0 0.0
    %100 = vmatprep.subr.mxu0 0.0
    %101 = vmatpush1.msra.mxu0 0.0
    %102 = vmatprep.subr.mxu0 0.0
    %103 = vmatpush1.msra.mxu0 0.0
    %104 = vmatprep.subr.mxu0 0.0
    %105 = vmatpush1.msra.mxu0 0.0
    %106 = vmatprep.subr.mxu0 0.0
    %107 = vmatpush1.msra.mxu0 0.0
    %108 = vmatprep.subr.mxu0 0.0
    %109 = vmatpush1.msra.mxu0 0.0
    %110 = vmatprep.subr.mxu0 0.0
    %111 = vmatpush1.msra.mxu0 0.0
    %112 = vmatprep.subr.mxu0 0.0
    %113 = vmatpush1.msra.mxu0 0.0
    %114 = vmatprep.subr.mxu0 0.0
    %115 = vmatpush1.msra.mxu0 0.0
    %116 = vmatprep.subr.mxu0 0.0
    %117 = vmatpush1.msra.mxu0 0.0
    %118 = vmatprep.subr.mxu0 0.0
    %119 = vmatpush1.msra.mxu0 0.0
    %120 = vmatprep.mubr.f32.mxu0 0.0
    %121 = vmatmul.mubr.f32.gmra.mrb[0].mxu0 %v47
    %v122 = vpop.f32.mrb[0].mxu0
    %v123 = vadd.f32 %v43, %v122
    %v124 = vpop.f32.mrb[0].mxu0
    %125 = vmatprep.mubr.f32.mxu0 0.0
    %126 = vmatmul.mubr.f32.gmra.mrb[0].mxu0 %v50
    %v127 = vpop.f32.mrb[0].mxu0
    %v128 = vadd.f32 %v43, %v127
    %v129 = vpop.f32.mrb[0].mxu0
    %130 = vdwg.mxu0
    %v131 = vld [vmem:[%s4] sm:$0xff]
    %v132 = vld [vmem:[%s4 + $0x8] sm:$0xff]
    %v133 = vld [vmem:[%s4 + $0x10] sm:$0xff]
    %v134 = vld [vmem:[%s4 + $0x18] sm:$0xff]
    %v135 = vld [vmem:[%s5] sm:$0x1]
    %v137 = vlaneseq
    %v138 = vshrl.u32 %v137, 7
    %v139 = vsub.s32 0, %v138
    %v140 = vrot.slane %v135, %v139
    %v141 = vld [vmem:[%s6] sm:$0xff]
    %v142 = vld [vmem:[%s6 + $0x8] sm:$0xff]
    %v143 = vld [vmem:[%s6 + $0x10] sm:$0xff]
    %v144 = vld [vmem:[%s6 + $0x18] sm:$0xff]
    %v145 = vld [vmem:[%s1] sm:$0x3]
    %s146 = scalar_lea.vmem %s1, 2
    %v147 = vld [vmem:[%s146] sm:$0x3]
    %vm148 = vcmask 261120
    %v150 = vsel %vm148, %v145, 0
    %152 = vmatprep.subr.mxu0 0.0
    %153 = vmatpush1.msra.mxu0 %v131
    %154 = vmatprep.subr.mxu0 0.0
    %155 = vmatpush1.msra.mxu0 %v132
    %156 = vmatprep.subr.mxu0 0.0
    %157 = vmatpush1.msra.mxu0 %v133
    %158 = vmatprep.subr.mxu0 0.0
    %159 = vmatpush1.msra.mxu0 %v134
    %160 = vmatprep.subr.mxu0 0.0
    %161 = vmatpush1.msra.mxu0 0.0
    %162 = vmatprep.subr.mxu0 0.0
    %163 = vmatpush1.msra.mxu0 0.0
    %164 = vmatprep.subr.mxu0 0.0
    %165 = vmatpush1.msra.mxu0 0.0
    %166 = vmatprep.subr.mxu0 0.0
    %167 = vmatpush1.msra.mxu0 0.0
    %168 = vmatprep.subr.mxu0 0.0
    %169 = vmatpush1.msra.mxu0 0.0
    %170 = vmatprep.subr.mxu0 0.0
    %171 = vmatpush1.msra.mxu0 0.0
    %172 = vmatprep.subr.mxu0 0.0
    %173 = vmatpush1.msra.mxu0 0.0
    %174 = vmatprep.subr.mxu0 0.0
    %175 = vmatpush1.msra.mxu0 0.0
    %176 = vmatprep.subr.mxu0 0.0
    %177 = vmatpush1.msra.mxu0 0.0
    %178 = vmatprep.subr.mxu0 0.0
    %179 = vmatpush1.msra.mxu0 0.0
    %180 = vmatprep.subr.mxu0 0.0
    %181 = vmatpush1.msra.mxu0 0.0
    %182 = vmatprep.subr.mxu0 0.0
    %183 = vmatpush1.msra.mxu0 0.0
    %184 = vmatprep.subr.mxu0 0.0
    %185 = vmatpush1.msra.mxu0 0.0
    %186 = vmatprep.subr.mxu0 0.0
    %187 = vmatpush1.msra.mxu0 0.0
    %188 = vmatprep.subr.mxu0 0.0
    %189 = vmatpush1.msra.mxu0 0.0
    %190 = vmatprep.subr.mxu0 0.0
    %191 = vmatpush1.msra.mxu0 0.0
    %192 = vmatprep.subr.mxu0 0.0
    %193 = vmatpush1.msra.mxu0 0.0
    %194 = vmatprep.subr.mxu0 0.0
    %195 = vmatpush1.msra.mxu0 0.0
    %196 = vmatprep.subr.mxu0 0.0
    %197 = vmatpush1.msra.mxu0 0.0
    %198 = vmatprep.subr.mxu0 0.0
    %199 = vmatpush1.msra.mxu0 0.0
    %200 = vmatprep.subr.mxu0 0.0
    %201 = vmatpush1.msra.mxu0 0.0
    %202 = vmatprep.subr.mxu0 0.0
    %203 = vmatpush1.msra.mxu0 0.0
    %204 = vmatprep.subr.mxu0 0.0
    %205 = vmatpush1.msra.mxu0 0.0
    %206 = vmatprep.subr.mxu0 0.0
    %207 = vmatpush1.msra.mxu0 0.0
    %208 = vmatprep.subr.mxu0 0.0
    %209 = vmatpush1.msra.mxu0 0.0
    %210 = vmatprep.subr.mxu0 0.0
    %211 = vmatpush1.msra.mxu0 0.0
    %212 = vmatprep.subr.mxu0 0.0
    %213 = vmatpush1.msra.mxu0 0.0
    %214 = vmatprep.subr.mxu0 0.0
    %215 = vmatpush1.msra.mxu0 0.0
    %216 = vmatprep.mubr.f32.mxu0 0.0
    %217 = vmatmul.mubr.f32.gmra.mrb[0].mxu0 %v150
    %v218 = vpop.f32.mrb[0].mxu0
    %v219 = vadd.f32 0.0, %v218
    %v220 = vpop.f32.mrb[0].mxu0
    %221 = vdwg.mxu0
    %v223 = vsel %vm148, %v147, 0
    %225 = vmatprep.subr.mxu0 0.0
    %226 = vmatpush1.msra.mxu0 %v141
    %227 = vmatprep.subr.mxu0 0.0
    %228 = vmatpush1.msra.mxu0 %v142
    %229 = vmatprep.subr.mxu0 0.0
    %230 = vmatpush1.msra.mxu0 %v143
    %231 = vmatprep.subr.mxu0 0.0
    %232 = vmatpush1.msra.mxu0 %v144
    %233 = vmatprep.subr.mxu0 0.0
    %234 = vmatpush1.msra.mxu0 0.0
    %235 = vmatprep.subr.mxu0 0.0
    %236 = vmatpush1.msra.mxu0 0.0
    %237 = vmatprep.subr.mxu0 0.0
    %238 = vmatpush1.msra.mxu0 0.0
    %239 = vmatprep.subr.mxu0 0.0
    %240 = vmatpush1.msra.mxu0 0.0
    %241 = vmatprep.subr.mxu0 0.0
    %242 = vmatpush1.msra.mxu0 0.0
    %243 = vmatprep.subr.mxu0 0.0
    %244 = vmatpush1.msra.mxu0 0.0
    %245 = vmatprep.subr.mxu0 0.0
    %246 = vmatpush1.msra.mxu0 0.0
    %247 = vmatprep.subr.mxu0 0.0
    %248 = vmatpush1.msra.mxu0 0.0
    %249 = vmatprep.subr.mxu0 0.0
    %250 = vmatpush1.msra.mxu0 0.0
    %251 = vmatprep.subr.mxu0 0.0
    %252 = vmatpush1.msra.mxu0 0.0
    %253 = vmatprep.subr.mxu0 0.0
    %254 = vmatpush1.msra.mxu0 0.0
    %255 = vmatprep.subr.mxu0 0.0
    %256 = vmatpush1.msra.mxu0 0.0
    %257 = vmatprep.subr.mxu0 0.0
    %258 = vmatpush1.msra.mxu0 0.0
    %259 = vmatprep.subr.mxu0 0.0
    %260 = vmatpush1.msra.mxu0 0.0
    %261 = vmatprep.subr.mxu0 0.0
    %262 = vmatpush1.msra.mxu0 0.0
    %263 = vmatprep.subr.mxu0 0.0
    %264 = vmatpush1.msra.mxu0 0.0
    %265 = vmatprep.subr.mxu0 0.0
    %266 = vmatpush1.msra.mxu0 0.0
    %267 = vmatprep.subr.mxu0 0.0
    %268 = vmatpush1.msra.mxu0 0.0
    %269 = vmatprep.subr.mxu0 0.0
    %270 = vmatpush1.msra.mxu0 0.0
    %271 = vmatprep.subr.mxu0 0.0
    %272 = vmatpush1.msra.mxu0 0.0
    %273 = vmatprep.subr.mxu0 0.0
    %274 = vmatpush1.msra.mxu0 0.0
    %275 = vmatprep.subr.mxu0 0.0
    %276 = vmatpush1.msra.mxu0 0.0
    %277 = vmatprep.subr.mxu0 0.0
    %278 = vmatpush1.msra.mxu0 0.0
    %279 = vmatprep.subr.mxu0 0.0
    %280 = vmatpush1.msra.mxu0 0.0
    %281 = vmatprep.subr.mxu0 0.0
    %282 = vmatpush1.msra.mxu0 0.0
    %283 = vmatprep.subr.mxu0 0.0
    %284 = vmatpush1.msra.mxu0 0.0
    %285 = vmatprep.subr.mxu0 0.0
    %286 = vmatpush1.msra.mxu0 0.0
    %287 = vmatprep.subr.mxu0 0.0
    %288 = vmatpush1.msra.mxu0 0.0
    %289 = vmatprep.mubr.f32.mxu0 0.0
    %290 = vmatmul.mubr.f32.gmra.mrb[0].mxu0 %v223
    %v291 = vpop.f32.mrb[0].mxu0
    %v292 = vadd.f32 0.0, %v291
    %v293 = vpop.f32.mrb[0].mxu0
    %294 = vdwg.mxu0
    %v295 = vadd.f32 %v123, %v219
    %v296 = vmax.f32 %v295, 0.0
    %v298 = vsel %vm148, %v296, 0
    %300 = vmatprep.subr.mxu0 0.0
    %301 = vmatpush1.msra.mxu0 %v131
    %302 = vmatprep.subr.mxu0 0.0
    %303 = vmatpush1.msra.mxu0 %v132
    %304 = vmatprep.subr.mxu0 0.0
    %305 = vmatpush1.msra.mxu0 %v133
    %306 = vmatprep.subr.mxu0 0.0
    %307 = vmatpush1.msra.mxu0 %v134
    %308 = vmatprep.subr.mxu0 0.0
    %309 = vmatpush1.msra.mxu0 0.0
    %310 = vmatprep.subr.mxu0 0.0
    %311 = vmatpush1.msra.mxu0 0.0
    %312 = vmatprep.subr.mxu0 0.0
    %313 = vmatpush1.msra.mxu0 0.0
    %314 = vmatprep.subr.mxu0 0.0
    %315 = vmatpush1.msra.mxu0 0.0
    %316 = vmatprep.subr.mxu0 0.0
    %317 = vmatpush1.msra.mxu0 0.0
    %318 = vmatprep.subr.mxu0 0.0
    %319 = vmatpush1.msra.mxu0 0.0
    %320 = vmatprep.subr.mxu0 0.0
    %321 = vmatpush1.msra.mxu0 0.0
    %322 = vmatprep.subr.mxu0 0.0
    %323 = vmatpush1.msra.mxu0 0.0
    %324 = vmatprep.subr.mxu0 0.0
    %325 = vmatpush1.msra.mxu0 0.0
    %326 = vmatprep.subr.mxu0 0.0
    %327 = vmatpush1.msra.mxu0 0.0
    %328 = vmatprep.subr.mxu0 0.0
    %329 = vmatpush1.msra.mxu0 0.0
    %330 = vmatprep.subr.mxu0 0.0
    %331 = vmatpush1.msra.mxu0 0.0
    %332 = vmatprep.subr.mxu0 0.0
    %333 = vmatpush1.msra.mxu0 0.0
    %334 = vmatprep.subr.mxu0 0.0
    %335 = vmatpush1.msra.mxu0 0.0
    %336 = vmatprep.subr.mxu0 0.0
    %337 = vmatpush1.msra.mxu0 0.0
    %338 = vmatprep.subr.mxu0 0.0
    %339 = vmatpush1.msra.mxu0 0.0
    %340 = vmatprep.subr.mxu0 0.0
    %341 = vmatpush1.msra.mxu0 0.0
    %342 = vmatprep.subr.mxu0 0.0
    %343 = vmatpush1.msra.mxu0 0.0
    %344 = vmatprep.subr.mxu0 0.0
    %345 = vmatpush1.msra.mxu0 0.0
    %346 = vmatprep.subr.mxu0 0.0
    %347 = vmatpush1.msra.mxu0 0.0
    %348 = vmatprep.subr.mxu0 0.0
    %349 = vmatpush1.msra.mxu0 0.0
    %350 = vmatprep.subr.mxu0 0.0
    %351 = vmatpush1.msra.mxu0 0.0
    %352 = vmatprep.subr.mxu0 0.0
    %353 = vmatpush1.msra.mxu0 0.0
    %354 = vmatprep.subr.mxu0 0.0
    %355 = vmatpush1.msra.mxu0 0.0
    %356 = vmatprep.subr.mxu0 0.0
    %357 = vmatpush1.msra.mxu0 0.0
    %358 = vmatprep.subr.mxu0 0.0
    %359 = vmatpush1.msra.mxu0 0.0
    %360 = vmatprep.subr.mxu0 0.0
    %361 = vmatpush1.msra.mxu0 0.0
    %362 = vmatprep.subr.mxu0 0.0
    %363 = vmatpush1.msra.mxu0 0.0
    %364 = vmatprep.mubr.f32.mxu0 0.0
    %365 = vmatmul.mubr.f32.gmra.mrb[0].mxu0 %v298
    %v366 = vpop.f32.mrb[0].mxu0
    %v367 = vadd.f32 0.0, %v366
    %v368 = vpop.f32.mrb[0].mxu0
    %369 = vdwg.mxu0
    %370 = vrot.lane.b32.xlu0 %v140, 32
    %v371 = vpop.permute.xlu0 %370
    %v373 = vadd.f32 %v367, %v371
    %v375 = vrot.slane %v367, 6
    %v377 = vadd.f32 %v123, %v375
    %v378 = vmax.f32 %v377, 0.0
    %v380 = vrot.slane %v378, 2
    %v381 = vsel %vm148, %v380, 0
    %383 = vmatprep.subr.mxu0 0.0
    %384 = vmatpush1.msra.mxu0 %v131
    %385 = vmatprep.subr.mxu0 0.0
    %386 = vmatpush1.msra.mxu0 %v132
    %387 = vmatprep.subr.mxu0 0.0
    %388 = vmatpush1.msra.mxu0 %v133
    %389 = vmatprep.subr.mxu0 0.0
    %390 = vmatpush1.msra.mxu0 %v134
    %391 = vmatprep.subr.mxu0 0.0
    %392 = vmatpush1.msra.mxu0 0.0
    %393 = vmatprep.subr.mxu0 0.0
    %394 = vmatpush1.msra.mxu0 0.0
    %395 = vmatprep.subr.mxu0 0.0
    %396 = vmatpush1.msra.mxu0 0.0
    %397 = vmatprep.subr.mxu0 0.0
    %398 = vmatpush1.msra.mxu0 0.0
    %399 = vmatprep.subr.mxu0 0.0
    %400 = vmatpush1.msra.mxu0 0.0
    %401 = vmatprep.subr.mxu0 0.0
    %402 = vmatpush1.msra.mxu0 0.0
    %403 = vmatprep.subr.mxu0 0.0
    %404 = vmatpush1.msra.mxu0 0.0
    %405 = vmatprep.subr.mxu0 0.0
    %406 = vmatpush1.msra.mxu0 0.0
    %407 = vmatprep.subr.mxu0 0.0
    %408 = vmatpush1.msra.mxu0 0.0
    %409 = vmatprep.subr.mxu0 0.0
    %410 = vmatpush1.msra.mxu0 0.0
    %411 = vmatprep.subr.mxu0 0.0
    %412 = vmatpush1.msra.mxu0 0.0
    %413 = vmatprep.subr.mxu0 0.0
    %414 = vmatpush1.msra.mxu0 0.0
    %415 = vmatprep.subr.mxu0 0.0
    %416 = vmatpush1.msra.mxu0 0.0
    %417 = vmatprep.subr.mxu0 0.0
    %418 = vmatpush1.msra.mxu0 0.0
    %419 = vmatprep.subr.mxu0 0.0
    %420 = vmatpush1.msra.mxu0 0.0
    %421 = vmatprep.subr.mxu0 0.0
    %422 = vmatpush1.msra.mxu0 0.0
    %423 = vmatprep.subr.mxu0 0.0
    %424 = vmatpush1.msra.mxu0 0.0
    %425 = vmatprep.subr.mxu0 0.0
    %426 = vmatpush1.msra.mxu0 0.0
    %427 = vmatprep.subr.mxu0 0.0
    %428 = vmatpush1.msra.mxu0 0.0
    %429 = vmatprep.subr.mxu0 0.0
    %430 = vmatpush1.msra.mxu0 0.0
    %431 = vmatprep.subr.mxu0 0.0
    %432 = vmatpush1.msra.mxu0 0.0
    %433 = vmatprep.subr.mxu0 0.0
    %434 = vmatpush1.msra.mxu0 0.0
    %435 = vmatprep.subr.mxu0 0.0
    %436 = vmatpush1.msra.mxu0 0.0
    %437 = vmatprep.subr.mxu0 0.0
    %438 = vmatpush1.msra.mxu0 0.0
    %439 = vmatprep.subr.mxu0 0.0
    %440 = vmatpush1.msra.mxu0 0.0
    %441 = vmatprep.subr.mxu0 0.0
    %442 = vmatpush1.msra.mxu0 0.0
    %443 = vmatprep.subr.mxu0 0.0
    %444 = vmatpush1.msra.mxu0 0.0
    %445 = vmatprep.subr.mxu0 0.0
    %446 = vmatpush1.msra.mxu0 0.0
    %447 = vmatprep.mubr.f32.mxu0 0.0
    %448 = vmatmul.mubr.f32.gmra.mrb[0].mxu0 %v381
    %v449 = vpop.f32.mrb[0].mxu0
    %v450 = vadd.f32 0.0, %v449
    %v451 = vpop.f32.mrb[0].mxu0
    %452 = vdwg.mxu0
    %v453 = vadd.f32 %v450, %v371
    %455 = vrot.lane.b32.xlu0 %v292, 32
    %v456 = vpop.permute.xlu0 %455
    %v458 = vadd.f32 %v373, %v456
    %v459 = vmax.f32 %v458, 0.0
    %461 = vrot.lane.b32.xlu0 %v459, 96
    %v462 = vpop.permute.xlu0 %461
    %v463 = vsel %vm148, %v462, 0
    %465 = vmatprep.subr.mxu0 0.0
    %466 = vmatpush1.msra.mxu0 %v141
    %467 = vmatprep.subr.mxu0 0.0
    %468 = vmatpush1.msra.mxu0 %v142
    %469 = vmatprep.subr.mxu0 0.0
    %470 = vmatpush1.msra.mxu0 %v143
    %471 = vmatprep.subr.mxu0 0.0
    %472 = vmatpush1.msra.mxu0 %v144
    %473 = vmatprep.subr.mxu0 0.0
    %474 = vmatpush1.msra.mxu0 0.0
    %475 = vmatprep.subr.mxu0 0.0
    %476 = vmatpush1.msra.mxu0 0.0
    %477 = vmatprep.subr.mxu0 0.0
    %478 = vmatpush1.msra.mxu0 0.0
    %479 = vmatprep.subr.mxu0 0.0
    %480 = vmatpush1.msra.mxu0 0.0
    %481 = vmatprep.subr.mxu0 0.0
    %482 = vmatpush1.msra.mxu0 0.0
    %483 = vmatprep.subr.mxu0 0.0
    %484 = vmatpush1.msra.mxu0 0.0
    %485 = vmatprep.subr.mxu0 0.0
    %486 = vmatpush1.msra.mxu0 0.0
    %487 = vmatprep.subr.mxu0 0.0
    %488 = vmatpush1.msra.mxu0 0.0
    %489 = vmatprep.subr.mxu0 0.0
    %490 = vmatpush1.msra.mxu0 0.0
    %491 = vmatprep.subr.mxu0 0.0
    %492 = vmatpush1.msra.mxu0 0.0
    %493 = vmatprep.subr.mxu0 0.0
    %494 = vmatpush1.msra.mxu0 0.0
    %495 = vmatprep.subr.mxu0 0.0
    %496 = vmatpush1.msra.mxu0 0.0
    %497 = vmatprep.subr.mxu0 0.0
    %498 = vmatpush1.msra.mxu0 0.0
    %499 = vmatprep.subr.mxu0 0.0
    %500 = vmatpush1.msra.mxu0 0.0
    %501 = vmatprep.subr.mxu0 0.0
    %502 = vmatpush1.msra.mxu0 0.0
    %503 = vmatprep.subr.mxu0 0.0
    %504 = vmatpush1.msra.mxu0 0.0
    %505 = vmatprep.subr.mxu0 0.0
    %506 = vmatpush1.msra.mxu0 0.0
    %507 = vmatprep.subr.mxu0 0.0
    %508 = vmatpush1.msra.mxu0 0.0
    %509 = vmatprep.subr.mxu0 0.0
    %510 = vmatpush1.msra.mxu0 0.0
    %511 = vmatprep.subr.mxu0 0.0
    %512 = vmatpush1.msra.mxu0 0.0
    %513 = vmatprep.subr.mxu0 0.0
    %514 = vmatpush1.msra.mxu0 0.0
    %515 = vmatprep.subr.mxu0 0.0
    %516 = vmatpush1.msra.mxu0 0.0
    %517 = vmatprep.subr.mxu0 0.0
    %518 = vmatpush1.msra.mxu0 0.0
    %519 = vmatprep.subr.mxu0 0.0
    %520 = vmatpush1.msra.mxu0 0.0
    %521 = vmatprep.subr.mxu0 0.0
    %522 = vmatpush1.msra.mxu0 0.0
    %523 = vmatprep.subr.mxu0 0.0
    %524 = vmatpush1.msra.mxu0 0.0
    %525 = vmatprep.subr.mxu0 0.0
    %526 = vmatpush1.msra.mxu0 0.0
    %527 = vmatprep.subr.mxu0 0.0
    %528 = vmatpush1.msra.mxu0 0.0
    %529 = vmatprep.mubr.f32.mxu0 0.0
    %530 = vmatmul.mubr.f32.gmra.mrb[0].mxu0 %v463
    %v531 = vpop.f32.mrb[0].mxu0
    %v532 = vadd.f32 0.0, %v531
    %v533 = vpop.f32.mrb[0].mxu0
    %534 = vdwg.mxu0
    %v536 = vrot.slane %v450, 4
    %v538 = vadd.f32 %v123, %v536
    %v539 = vmax.f32 %v538, 0.0
    %v541 = vrot.slane %v539, 4
    %v542 = vsel %vm148, %v541, 0
    %544 = vmatprep.subr.mxu0 0.0
    %545 = vmatpush1.msra.mxu0 %v131
    %546 = vmatprep.subr.mxu0 0.0
    %547 = vmatpush1.msra.mxu0 %v132
    %548 = vmatprep.subr.mxu0 0.0
    %549 = vmatpush1.msra.mxu0 %v133
    %550 = vmatprep.subr.mxu0 0.0
    %551 = vmatpush1.msra.mxu0 %v134
    %552 = vmatprep.subr.mxu0 0.0
    %553 = vmatpush1.msra.mxu0 0.0
    %554 = vmatprep.subr.mxu0 0.0
    %555 = vmatpush1.msra.mxu0 0.0
    %556 = vmatprep.subr.mxu0 0.0
    %557 = vmatpush1.msra.mxu0 0.0
    %558 = vmatprep.subr.mxu0 0.0
    %559 = vmatpush1.msra.mxu0 0.0
    %560 = vmatprep.subr.mxu0 0.0
    %561 = vmatpush1.msra.mxu0 0.0
    %562 = vmatprep.subr.mxu0 0.0
    %563 = vmatpush1.msra.mxu0 0.0
    %564 = vmatprep.subr.mxu0 0.0
    %565 = vmatpush1.msra.mxu0 0.0
    %566 = vmatprep.subr.mxu0 0.0
    %567 = vmatpush1.msra.mxu0 0.0
    %568 = vmatprep.subr.mxu0 0.0
    %569 = vmatpush1.msra.mxu0 0.0
    %570 = vmatprep.subr.mxu0 0.0
    %571 = vmatpush1.msra.mxu0 0.0
    %572 = vmatprep.subr.mxu0 0.0
    %573 = vmatpush1.msra.mxu0 0.0
    %574 = vmatprep.subr.mxu0 0.0
    %575 = vmatpush1.msra.mxu0 0.0
    %576 = vmatprep.subr.mxu0 0.0
    %577 = vmatpush1.msra.mxu0 0.0
    %578 = vmatprep.subr.mxu0 0.0
    %579 = vmatpush1.msra.mxu0 0.0
    %580 = vmatprep.subr.mxu0 0.0
    %581 = vmatpush1.msra.mxu0 0.0
    %582 = vmatprep.subr.mxu0 0.0
    %583 = vmatpush1.msra.mxu0 0.0
    %584 = vmatprep.subr.mxu0 0.0
    %585 = vmatpush1.msra.mxu0 0.0
    %586 = vmatprep.subr.mxu0 0.0
    %587 = vmatpush1.msra.mxu0 0.0
    %588 = vmatprep.subr.mxu0 0.0
    %589 = vmatpush1.msra.mxu0 0.0
    %590 = vmatprep.subr.mxu0 0.0
    %591 = vmatpush1.msra.mxu0 0.0
    %592 = vmatprep.subr.mxu0 0.0
    %593 = vmatpush1.msra.mxu0 0.0
    %594 = vmatprep.subr.mxu0 0.0
    %595 = vmatpush1.msra.mxu0 0.0
    %596 = vmatprep.subr.mxu0 0.0
    %597 = vmatpush1.msra.mxu0 0.0
    %598 = vmatprep.subr.mxu0 0.0
    %599 = vmatpush1.msra.mxu0 0.0
    %600 = vmatprep.subr.mxu0 0.0
    %601 = vmatpush1.msra.mxu0 0.0
    %602 = vmatprep.subr.mxu0 0.0
    %603 = vmatpush1.msra.mxu0 0.0
    %604 = vmatprep.subr.mxu0 0.0
    %605 = vmatpush1.msra.mxu0 0.0
    %606 = vmatprep.subr.mxu0 0.0
    %607 = vmatpush1.msra.mxu0 0.0
    %608 = vmatprep.mubr.f32.mxu0 0.0
    %609 = vmatmul.mubr.f32.gmra.mrb[0].mxu0 %v542
    %v610 = vpop.f32.mrb[0].mxu0
    %v611 = vadd.f32 0.0, %v610
    %v612 = vpop.f32.mrb[0].mxu0
    %613 = vdwg.mxu0
    %v614 = vadd.f32 %v611, %v371
    %616 = vrot.lane.b32.xlu0 %v532, 32
    %v617 = vpop.permute.xlu0 %616
    %v619 = vadd.f32 %v453, %v617
    %v620 = vmax.f32 %v619, 0.0
    %622 = vrot.lane.b32.xlu0 %v620, 96
    %v623 = vpop.permute.xlu0 %622
    %v624 = vsel %vm148, %v623, 0
    %626 = vmatprep.subr.mxu0 0.0
    %627 = vmatpush1.msra.mxu0 %v141
    %628 = vmatprep.subr.mxu0 0.0
    %629 = vmatpush1.msra.mxu0 %v142
    %630 = vmatprep.subr.mxu0 0.0
    %631 = vmatpush1.msra.mxu0 %v143
    %632 = vmatprep.subr.mxu0 0.0
    %633 = vmatpush1.msra.mxu0 %v144
    %634 = vmatprep.subr.mxu0 0.0
    %635 = vmatpush1.msra.mxu0 0.0
    %636 = vmatprep.subr.mxu0 0.0
    %637 = vmatpush1.msra.mxu0 0.0
    %638 = vmatprep.subr.mxu0 0.0
    %639 = vmatpush1.msra.mxu0 0.0
    %640 = vmatprep.subr.mxu0 0.0
    %641 = vmatpush1.msra.mxu0 0.0
    %642 = vmatprep.subr.mxu0 0.0
    %643 = vmatpush1.msra.mxu0 0.0
    %644 = vmatprep.subr.mxu0 0.0
    %645 = vmatpush1.msra.mxu0 0.0
    %646 = vmatprep.subr.mxu0 0.0
    %647 = vmatpush1.msra.mxu0 0.0
    %648 = vmatprep.subr.mxu0 0.0
    %649 = vmatpush1.msra.mxu0 0.0
    %650 = vmatprep.subr.mxu0 0.0
    %651 = vmatpush1.msra.mxu0 0.0
    %652 = vmatprep.subr.mxu0 0.0
    %653 = vmatpush1.msra.mxu0 0.0
    %654 = vmatprep.subr.mxu0 0.0
    %655 = vmatpush1.msra.mxu0 0.0
    %656 = vmatprep.subr.mxu0 0.0
    %657 = vmatpush1.msra.mxu0 0.0
    %658 = vmatprep.subr.mxu0 0.0
    %659 = vmatpush1.msra.mxu0 0.0
    %660 = vmatprep.subr.mxu0 0.0
    %661 = vmatpush1.msra.mxu0 0.0
    %662 = vmatprep.subr.mxu0 0.0
    %663 = vmatpush1.msra.mxu0 0.0
    %664 = vmatprep.subr.mxu0 0.0
    %665 = vmatpush1.msra.mxu0 0.0
    %666 = vmatprep.subr.mxu0 0.0
    %667 = vmatpush1.msra.mxu0 0.0
    %668 = vmatprep.subr.mxu0 0.0
    %669 = vmatpush1.msra.mxu0 0.0
    %670 = vmatprep.subr.mxu0 0.0
    %671 = vmatpush1.msra.mxu0 0.0
    %672 = vmatprep.subr.mxu0 0.0
    %673 = vmatpush1.msra.mxu0 0.0
    %674 = vmatprep.subr.mxu0 0.0
    %675 = vmatpush1.msra.mxu0 0.0
    %676 = vmatprep.subr.mxu0 0.0
    %677 = vmatpush1.msra.mxu0 0.0
    %678 = vmatprep.subr.mxu0 0.0
    %679 = vmatpush1.msra.mxu0 0.0
    %680 = vmatprep.subr.mxu0 0.0
    %681 = vmatpush1.msra.mxu0 0.0
    %682 = vmatprep.subr.mxu0 0.0
    %683 = vmatpush1.msra.mxu0 0.0
    %684 = vmatprep.subr.mxu0 0.0
    %685 = vmatpush1.msra.mxu0 0.0
    %686 = vmatprep.subr.mxu0 0.0
    %687 = vmatpush1.msra.mxu0 0.0
    %688 = vmatprep.subr.mxu0 0.0
    %689 = vmatpush1.msra.mxu0 0.0
    %690 = vmatprep.mubr.f32.mxu0 0.0
    %691 = vmatmul.mubr.f32.gmra.mrb[0].mxu0 %v624
    %v692 = vpop.f32.mrb[0].mxu0
    %v693 = vadd.f32 0.0, %v692
    %v694 = vpop.f32.mrb[0].mxu0
    %695 = vdwg.mxu0
    %v697 = vrot.slane %v611, 2
    %v699 = vadd.f32 %v123, %v697
    %v700 = vmax.f32 %v699, 0.0
    %v702 = vrot.slane %v700, 6
    %v703 = vsel %vm148, %v702, 0
    %705 = vmatprep.subr.mxu0 0.0
    %706 = vmatpush1.msra.mxu0 %v131
    %707 = vmatprep.subr.mxu0 0.0
    %708 = vmatpush1.msra.mxu0 %v132
    %709 = vmatprep.subr.mxu0 0.0
    %710 = vmatpush1.msra.mxu0 %v133
    %711 = vmatprep.subr.mxu0 0.0
    %712 = vmatpush1.msra.mxu0 %v134
    %713 = vmatprep.subr.mxu0 0.0
    %714 = vmatpush1.msra.mxu0 0.0
    %715 = vmatprep.subr.mxu0 0.0
    %716 = vmatpush1.msra.mxu0 0.0
    %717 = vmatprep.subr.mxu0 0.0
    %718 = vmatpush1.msra.mxu0 0.0
    %719 = vmatprep.subr.mxu0 0.0
    %720 = vmatpush1.msra.mxu0 0.0
    %721 = vmatprep.subr.mxu0 0.0
    %722 = vmatpush1.msra.mxu0 0.0
    %723 = vmatprep.subr.mxu0 0.0
    %724 = vmatpush1.msra.mxu0 0.0
    %725 = vmatprep.subr.mxu0 0.0
    %726 = vmatpush1.msra.mxu0 0.0
    %727 = vmatprep.subr.mxu0 0.0
    %728 = vmatpush1.msra.mxu0 0.0
    %729 = vmatprep.subr.mxu0 0.0
    %730 = vmatpush1.msra.mxu0 0.0
    %731 = vmatprep.subr.mxu0 0.0
    %732 = vmatpush1.msra.mxu0 0.0
    %733 = vmatprep.subr.mxu0 0.0
    %734 = vmatpush1.msra.mxu0 0.0
    %735 = vmatprep.subr.mxu0 0.0
    %736 = vmatpush1.msra.mxu0 0.0
    %737 = vmatprep.subr.mxu0 0.0
    %738 = vmatpush1.msra.mxu0 0.0
    %739 = vmatprep.subr.mxu0 0.0
    %740 = vmatpush1.msra.mxu0 0.0
    %741 = vmatprep.subr.mxu0 0.0
    %742 = vmatpush1.msra.mxu0 0.0
    %743 = vmatprep.subr.mxu0 0.0
    %744 = vmatpush1.msra.mxu0 0.0
    %745 = vmatprep.subr.mxu0 0.0
    %746 = vmatpush1.msra.mxu0 0.0
    %747 = vmatprep.subr.mxu0 0.0
    %748 = vmatpush1.msra.mxu0 0.0
    %749 = vmatprep.subr.mxu0 0.0
    %750 = vmatpush1.msra.mxu0 0.0
    %751 = vmatprep.subr.mxu0 0.0
    %752 = vmatpush1.msra.mxu0 0.0
    %753 = vmatprep.subr.mxu0 0.0
    %754 = vmatpush1.msra.mxu0 0.0
    %755 = vmatprep.subr.mxu0 0.0
    %756 = vmatpush1.msra.mxu0 0.0
    %757 = vmatprep.subr.mxu0 0.0
    %758 = vmatpush1.msra.mxu0 0.0
    %759 = vmatprep.subr.mxu0 0.0
    %760 = vmatpush1.msra.mxu0 0.0
    %761 = vmatprep.subr.mxu0 0.0
    %762 = vmatpush1.msra.mxu0 0.0
    %763 = vmatprep.subr.mxu0 0.0
    %764 = vmatpush1.msra.mxu0 0.0
    %765 = vmatprep.subr.mxu0 0.0
    %766 = vmatpush1.msra.mxu0 0.0
    %767 = vmatprep.subr.mxu0 0.0
    %768 = vmatpush1.msra.mxu0 0.0
    %769 = vmatprep.mubr.f32.mxu0 0.0
    %770 = vmatmul.mubr.f32.gmra.mrb[0].mxu0 %v703
    %v771 = vpop.f32.mrb[0].mxu0
    %v772 = vadd.f32 0.0, %v771
    %v773 = vpop.f32.mrb[0].mxu0
    %774 = vdwg.mxu0
    %v775 = vadd.f32 %v772, %v371
    %777 = vrot.lane.b32.xlu0 %v693, 32
    %v778 = vpop.permute.xlu0 %777
    %v780 = vadd.f32 %v614, %v778
    %v781 = vmax.f32 %v780, 0.0
    %783 = vrot.lane.b32.xlu0 %v781, 96
    %v784 = vpop.permute.xlu0 %783
    %v785 = vsel %vm148, %v784, 0
    %787 = vmatprep.subr.mxu0 0.0
    %788 = vmatpush1.msra.mxu0 %v141
    %789 = vmatprep.subr.mxu0 0.0
    %790 = vmatpush1.msra.mxu0 %v142
    %791 = vmatprep.subr.mxu0 0.0
    %792 = vmatpush1.msra.mxu0 %v143
    %793 = vmatprep.subr.mxu0 0.0
    %794 = vmatpush1.msra.mxu0 %v144
    %795 = vmatprep.subr.mxu0 0.0
    %796 = vmatpush1.msra.mxu0 0.0
    %797 = vmatprep.subr.mxu0 0.0
    %798 = vmatpush1.msra.mxu0 0.0
    %799 = vmatprep.subr.mxu0 0.0
    %800 = vmatpush1.msra.mxu0 0.0
    %801 = vmatprep.subr.mxu0 0.0
    %802 = vmatpush1.msra.mxu0 0.0
    %803 = vmatprep.subr.mxu0 0.0
    %804 = vmatpush1.msra.mxu0 0.0
    %805 = vmatprep.subr.mxu0 0.0
    %806 = vmatpush1.msra.mxu0 0.0
    %807 = vmatprep.subr.mxu0 0.0
    %808 = vmatpush1.msra.mxu0 0.0
    %809 = vmatprep.subr.mxu0 0.0
    %810 = vmatpush1.msra.mxu0 0.0
    %811 = vmatprep.subr.mxu0 0.0
    %812 = vmatpush1.msra.mxu0 0.0
    %813 = vmatprep.subr.mxu0 0.0
    %814 = vmatpush1.msra.mxu0 0.0
    %815 = vmatprep.subr.mxu0 0.0
    %816 = vmatpush1.msra.mxu0 0.0
    %817 = vmatprep.subr.mxu0 0.0
    %818 = vmatpush1.msra.mxu0 0.0
    %819 = vmatprep.subr.mxu0 0.0
    %820 = vmatpush1.msra.mxu0 0.0
    %821 = vmatprep.subr.mxu0 0.0
    %822 = vmatpush1.msra.mxu0 0.0
    %823 = vmatprep.subr.mxu0 0.0
    %824 = vmatpush1.msra.mxu0 0.0
    %825 = vmatprep.subr.mxu0 0.0
    %826 = vmatpush1.msra.mxu0 0.0
    %827 = vmatprep.subr.mxu0 0.0
    %828 = vmatpush1.msra.mxu0 0.0
    %829 = vmatprep.subr.mxu0 0.0
    %830 = vmatpush1.msra.mxu0 0.0
    %831 = vmatprep.subr.mxu0 0.0
    %832 = vmatpush1.msra.mxu0 0.0
    %833 = vmatprep.subr.mxu0 0.0
    %834 = vmatpush1.msra.mxu0 0.0
    %835 = vmatprep.subr.mxu0 0.0
    %836 = vmatpush1.msra.mxu0 0.0
    %837 = vmatprep.subr.mxu0 0.0
    %838 = vmatpush1.msra.mxu0 0.0
    %839 = vmatprep.subr.mxu0 0.0
    %840 = vmatpush1.msra.mxu0 0.0
    %841 = vmatprep.subr.mxu0 0.0
    %842 = vmatpush1.msra.mxu0 0.0
    %843 = vmatprep.subr.mxu0 0.0
    %844 = vmatpush1.msra.mxu0 0.0
    %845 = vmatprep.subr.mxu0 0.0
    %846 = vmatpush1.msra.mxu0 0.0
    %847 = vmatprep.subr.mxu0 0.0
    %848 = vmatpush1.msra.mxu0 0.0
    %849 = vmatprep.subr.mxu0 0.0
    %850 = vmatpush1.msra.mxu0 0.0
    %851 = vmatprep.mubr.f32.mxu0 0.0
    %852 = vmatmul.mubr.f32.gmra.mrb[0].mxu0 %v785
    %v853 = vpop.f32.mrb[0].mxu0
    %v854 = vadd.f32 0.0, %v853
    %v855 = vpop.f32.mrb[0].mxu0
    %856 = vdwg.mxu0
    %v857 = vadd.f32 %v128, %v772
    %v858 = vmax.f32 %v857, 0.0
    %v860 = vsel %vm148, %v858, 0
    %862 = vmatprep.subr.mxu0 0.0
    %863 = vmatpush1.msra.mxu0 %v131
    %864 = vmatprep.subr.mxu0 0.0
    %865 = vmatpush1.msra.mxu0 %v132
    %866 = vmatprep.subr.mxu0 0.0
    %867 = vmatpush1.msra.mxu0 %v133
    %868 = vmatprep.subr.mxu0 0.0
    %869 = vmatpush1.msra.mxu0 %v134
    %870 = vmatprep.subr.mxu0 0.0
    %871 = vmatpush1.msra.mxu0 0.0
    %872 = vmatprep.subr.mxu0 0.0
    %873 = vmatpush1.msra.mxu0 0.0
    %874 = vmatprep.subr.mxu0 0.0
    %875 = vmatpush1.msra.mxu0 0.0
    %876 = vmatprep.subr.mxu0 0.0
    %877 = vmatpush1.msra.mxu0 0.0
    %878 = vmatprep.subr.mxu0 0.0
    %879 = vmatpush1.msra.mxu0 0.0
    %880 = vmatprep.subr.mxu0 0.0
    %881 = vmatpush1.msra.mxu0 0.0
    %882 = vmatprep.subr.mxu0 0.0
    %883 = vmatpush1.msra.mxu0 0.0
    %884 = vmatprep.subr.mxu0 0.0
    %885 = vmatpush1.msra.mxu0 0.0
    %886 = vmatprep.subr.mxu0 0.0
    %887 = vmatpush1.msra.mxu0 0.0
    %888 = vmatprep.subr.mxu0 0.0
    %889 = vmatpush1.msra.mxu0 0.0
    %890 = vmatprep.subr.mxu0 0.0
    %891 = vmatpush1.msra.mxu0 0.0
    %892 = vmatprep.subr.mxu0 0.0
    %893 = vmatpush1.msra.mxu0 0.0
    %894 = vmatprep.subr.mxu0 0.0
    %895 = vmatpush1.msra.mxu0 0.0
    %896 = vmatprep.subr.mxu0 0.0
    %897 = vmatpush1.msra.mxu0 0.0
    %898 = vmatprep.subr.mxu0 0.0
    %899 = vmatpush1.msra.mxu0 0.0
    %900 = vmatprep.subr.mxu0 0.0
    %901 = vmatpush1.msra.mxu0 0.0
    %902 = vmatprep.subr.mxu0 0.0
    %903 = vmatpush1.msra.mxu0 0.0
    %904 = vmatprep.subr.mxu0 0.0
    %905 = vmatpush1.msra.mxu0 0.0
    %906 = vmatprep.subr.mxu0 0.0
    %907 = vmatpush1.msra.mxu0 0.0
    %908 = vmatprep.subr.mxu0 0.0
    %909 = vmatpush1.msra.mxu0 0.0
    %910 = vmatprep.subr.mxu0 0.0
    %911 = vmatpush1.msra.mxu0 0.0
    %912 = vmatprep.subr.mxu0 0.0
    %913 = vmatpush1.msra.mxu0 0.0
    %914 = vmatprep.subr.mxu0 0.0
    %915 = vmatpush1.msra.mxu0 0.0
    %916 = vmatprep.subr.mxu0 0.0
    %917 = vmatpush1.msra.mxu0 0.0
    %918 = vmatprep.subr.mxu0 0.0
    %919 = vmatpush1.msra.mxu0 0.0
    %920 = vmatprep.subr.mxu0 0.0
    %921 = vmatpush1.msra.mxu0 0.0
    %922 = vmatprep.subr.mxu0 0.0
    %923 = vmatpush1.msra.mxu0 0.0
    %924 = vmatprep.subr.mxu0 0.0
    %925 = vmatpush1.msra.mxu0 0.0
    %926 = vmatprep.mubr.f32.mxu0 0.0
    %927 = vmatmul.mubr.f32.gmra.mrb[0].mxu0 %v860
    %v928 = vpop.f32.mrb[0].mxu0
    %v929 = vadd.f32 0.0, %v928
    %v930 = vpop.f32.mrb[0].mxu0
    %931 = vdwg.mxu0
    %v932 = vadd.f32 %v929, %v371
    %934 = vrot.lane.b32.xlu0 %v854, 32
    %v935 = vpop.permute.xlu0 %934
    %v937 = vadd.f32 %v775, %v935
    %v938 = vmax.f32 %v937, 0.0
    %940 = vrot.lane.b32.xlu0 %v938, 96
    %v941 = vpop.permute.xlu0 %940
    %v942 = vsel %vm148, %v941, 0
    %944 = vmatprep.subr.mxu0 0.0
    %945 = vmatpush1.msra.mxu0 %v141
    %946 = vmatprep.subr.mxu0 0.0
    %947 = vmatpush1.msra.mxu0 %v142
    %948 = vmatprep.subr.mxu0 0.0
    %949 = vmatpush1.msra.mxu0 %v143
    %950 = vmatprep.subr.mxu0 0.0
    %951 = vmatpush1.msra.mxu0 %v144
    %952 = vmatprep.subr.mxu0 0.0
    %953 = vmatpush1.msra.mxu0 0.0
    %954 = vmatprep.subr.mxu0 0.0
    %955 = vmatpush1.msra.mxu0 0.0
    %956 = vmatprep.subr.mxu0 0.0
    %957 = vmatpush1.msra.mxu0 0.0
    %958 = vmatprep.subr.mxu0 0.0
    %959 = vmatpush1.msra.mxu0 0.0
    %960 = vmatprep.subr.mxu0 0.0
    %961 = vmatpush1.msra.mxu0 0.0
    %962 = vmatprep.subr.mxu0 0.0
    %963 = vmatpush1.msra.mxu0 0.0
    %964 = vmatprep.subr.mxu0 0.0
    %965 = vmatpush1.msra.mxu0 0.0
    %966 = vmatprep.subr.mxu0 0.0
    %967 = vmatpush1.msra.mxu0 0.0
    %968 = vmatprep.subr.mxu0 0.0
    %969 = vmatpush1.msra.mxu0 0.0
    %970 = vmatprep.subr.mxu0 0.0
    %971 = vmatpush1.msra.mxu0 0.0
    %972 = vmatprep.subr.mxu0 0.0
    %973 = vmatpush1.msra.mxu0 0.0
    %974 = vmatprep.subr.mxu0 0.0
    %975 = vmatpush1.msra.mxu0 0.0
    %976 = vmatprep.subr.mxu0 0.0
    %977 = vmatpush1.msra.mxu0 0.0
    %978 = vmatprep.subr.mxu0 0.0
    %979 = vmatpush1.msra.mxu0 0.0
    %980 = vmatprep.subr.mxu0 0.0
    %981 = vmatpush1.msra.mxu0 0.0
    %982 = vmatprep.subr.mxu0 0.0
    %983 = vmatpush1.msra.mxu0 0.0
    %984 = vmatprep.subr.mxu0 0.0
    %985 = vmatpush1.msra.mxu0 0.0
    %986 = vmatprep.subr.mxu0 0.0
    %987 = vmatpush1.msra.mxu0 0.0
    %988 = vmatprep.subr.mxu0 0.0
    %989 = vmatpush1.msra.mxu0 0.0
    %990 = vmatprep.subr.mxu0 0.0
    %991 = vmatpush1.msra.mxu0 0.0
    %992 = vmatprep.subr.mxu0 0.0
    %993 = vmatpush1.msra.mxu0 0.0
    %994 = vmatprep.subr.mxu0 0.0
    %995 = vmatpush1.msra.mxu0 0.0
    %996 = vmatprep.subr.mxu0 0.0
    %997 = vmatpush1.msra.mxu0 0.0
    %998 = vmatprep.subr.mxu0 0.0
    %999 = vmatpush1.msra.mxu0 0.0
    %1000 = vmatprep.subr.mxu0 0.0
    %1001 = vmatpush1.msra.mxu0 0.0
    %1002 = vmatprep.subr.mxu0 0.0
    %1003 = vmatpush1.msra.mxu0 0.0
    %1004 = vmatprep.subr.mxu0 0.0
    %1005 = vmatpush1.msra.mxu0 0.0
    %1006 = vmatprep.subr.mxu0 0.0
    %1007 = vmatpush1.msra.mxu0 0.0
    %1008 = vmatprep.mubr.f32.mxu0 0.0
    %1009 = vmatmul.mubr.f32.gmra.mrb[0].mxu0 %v942
    %v1010 = vpop.f32.mrb[0].mxu0
    %v1011 = vadd.f32 0.0, %v1010
    %v1012 = vpop.f32.mrb[0].mxu0
    %1013 = vdwg.mxu0
    %v1015 = vrot.slane %v929, 6
    %v1017 = vadd.f32 %v128, %v1015
    %v1018 = vmax.f32 %v1017, 0.0
    %v1020 = vrot.slane %v1018, 2
    %v1021 = vsel %vm148, %v1020, 0
    %1023 = vmatprep.subr.mxu0 0.0
    %1024 = vmatpush1.msra.mxu0 %v131
    %1025 = vmatprep.subr.mxu0 0.0
    %1026 = vmatpush1.msra.mxu0 %v132
    %1027 = vmatprep.subr.mxu0 0.0
    %1028 = vmatpush1.msra.mxu0 %v133
    %1029 = vmatprep.subr.mxu0 0.0
    %1030 = vmatpush1.msra.mxu0 %v134
    %1031 = vmatprep.subr.mxu0 0.0
    %1032 = vmatpush1.msra.mxu0 0.0
    %1033 = vmatprep.subr.mxu0 0.0
    %1034 = vmatpush1.msra.mxu0 0.0
    %1035 = vmatprep.subr.mxu0 0.0
    %1036 = vmatpush1.msra.mxu0 0.0
    %1037 = vmatprep.subr.mxu0 0.0
    %1038 = vmatpush1.msra.mxu0 0.0
    %1039 = vmatprep.subr.mxu0 0.0
    %1040 = vmatpush1.msra.mxu0 0.0
    %1041 = vmatprep.subr.mxu0 0.0
    %1042 = vmatpush1.msra.mxu0 0.0
    %1043 = vmatprep.subr.mxu0 0.0
    %1044 = vmatpush1.msra.mxu0 0.0
    %1045 = vmatprep.subr.mxu0 0.0
    %1046 = vmatpush1.msra.mxu0 0.0
    %1047 = vmatprep.subr.mxu0 0.0
    %1048 = vmatpush1.msra.mxu0 0.0
    %1049 = vmatprep.subr.mxu0 0.0
    %1050 = vmatpush1.msra.mxu0 0.0
    %1051 = vmatprep.subr.mxu0 0.0
    %1052 = vmatpush1.msra.mxu0 0.0
    %1053 = vmatprep.subr.mxu0 0.0
    %1054 = vmatpush1.msra.mxu0 0.0
    %1055 = vmatprep.subr.mxu0 0.0
    %1056 = vmatpush1.msra.mxu0 0.0
    %1057 = vmatprep.subr.mxu0 0.0
    %1058 = vmatpush1.msra.mxu0 0.0
    %1059 = vmatprep.subr.mxu0 0.0
    %1060 = vmatpush1.msra.mxu0 0.0
    %1061 = vmatprep.subr.mxu0 0.0
    %1062 = vmatpush1.msra.mxu0 0.0
    %1063 = vmatprep.subr.mxu0 0.0
    %1064 = vmatpush1.msra.mxu0 0.0
    %1065 = vmatprep.subr.mxu0 0.0
    %1066 = vmatpush1.msra.mxu0 0.0
    %1067 = vmatprep.subr.mxu0 0.0
    %1068 = vmatpush1.msra.mxu0 0.0
    %1069 = vmatprep.subr.mxu0 0.0
    %1070 = vmatpush1.msra.mxu0 0.0
    %1071 = vmatprep.subr.mxu0 0.0
    %1072 = vmatpush1.msra.mxu0 0.0
    %1073 = vmatprep.subr.mxu0 0.0
    %1074 = vmatpush1.msra.mxu0 0.0
    %1075 = vmatprep.subr.mxu0 0.0
    %1076 = vmatpush1.msra.mxu0 0.0
    %1077 = vmatprep.subr.mxu0 0.0
    %1078 = vmatpush1.msra.mxu0 0.0
    %1079 = vmatprep.subr.mxu0 0.0
    %1080 = vmatpush1.msra.mxu0 0.0
    %1081 = vmatprep.subr.mxu0 0.0
    %1082 = vmatpush1.msra.mxu0 0.0
    %1083 = vmatprep.subr.mxu0 0.0
    %1084 = vmatpush1.msra.mxu0 0.0
    %1085 = vmatprep.subr.mxu0 0.0
    %1086 = vmatpush1.msra.mxu0 0.0
    %1087 = vmatprep.mubr.f32.mxu0 0.0
    %1088 = vmatmul.mubr.f32.gmra.mrb[0].mxu0 %v1021
    %v1089 = vpop.f32.mrb[0].mxu0
    %v1090 = vadd.f32 0.0, %v1089
    %v1091 = vpop.f32.mrb[0].mxu0
    %1092 = vdwg.mxu0
    %v1093 = vadd.f32 %v1090, %v371
    %1095 = vrot.lane.b32.xlu0 %v1011, 32
    %v1096 = vpop.permute.xlu0 %1095
    %v1098 = vadd.f32 %v932, %v1096
    %v1099 = vmax.f32 %v1098, 0.0
    %1101 = vrot.lane.b32.xlu0 %v1099, 96
    %v1102 = vpop.permute.xlu0 %1101
    %v1103 = vsel %vm148, %v1102, 0
    %1105 = vmatprep.subr.mxu0 0.0
    %1106 = vmatpush1.msra.mxu0 %v141
    %1107 = vmatprep.subr.mxu0 0.0
    %1108 = vmatpush1.msra.mxu0 %v142
    %1109 = vmatprep.subr.mxu0 0.0
    %1110 = vmatpush1.msra.mxu0 %v143
    %1111 = vmatprep.subr.mxu0 0.0
    %1112 = vmatpush1.msra.mxu0 %v144
    %1113 = vmatprep.subr.mxu0 0.0
    %1114 = vmatpush1.msra.mxu0 0.0
    %1115 = vmatprep.subr.mxu0 0.0
    %1116 = vmatpush1.msra.mxu0 0.0
    %1117 = vmatprep.subr.mxu0 0.0
    %1118 = vmatpush1.msra.mxu0 0.0
    %1119 = vmatprep.subr.mxu0 0.0
    %1120 = vmatpush1.msra.mxu0 0.0
    %1121 = vmatprep.subr.mxu0 0.0
    %1122 = vmatpush1.msra.mxu0 0.0
    %1123 = vmatprep.subr.mxu0 0.0
    %1124 = vmatpush1.msra.mxu0 0.0
    %1125 = vmatprep.subr.mxu0 0.0
    %1126 = vmatpush1.msra.mxu0 0.0
    %1127 = vmatprep.subr.mxu0 0.0
    %1128 = vmatpush1.msra.mxu0 0.0
    %1129 = vmatprep.subr.mxu0 0.0
    %1130 = vmatpush1.msra.mxu0 0.0
    %1131 = vmatprep.subr.mxu0 0.0
    %1132 = vmatpush1.msra.mxu0 0.0
    %1133 = vmatprep.subr.mxu0 0.0
    %1134 = vmatpush1.msra.mxu0 0.0
    %1135 = vmatprep.subr.mxu0 0.0
    %1136 = vmatpush1.msra.mxu0 0.0
    %1137 = vmatprep.subr.mxu0 0.0
    %1138 = vmatpush1.msra.mxu0 0.0
    %1139 = vmatprep.subr.mxu0 0.0
    %1140 = vmatpush1.msra.mxu0 0.0
    %1141 = vmatprep.subr.mxu0 0.0
    %1142 = vmatpush1.msra.mxu0 0.0
    %1143 = vmatprep.subr.mxu0 0.0
    %1144 = vmatpush1.msra.mxu0 0.0
    %1145 = vmatprep.subr.mxu0 0.0
    %1146 = vmatpush1.msra.mxu0 0.0
    %1147 = vmatprep.subr.mxu0 0.0
    %1148 = vmatpush1.msra.mxu0 0.0
    %1149 = vmatprep.subr.mxu0 0.0
    %1150 = vmatpush1.msra.mxu0 0.0
    %1151 = vmatprep.subr.mxu0 0.0
    %1152 = vmatpush1.msra.mxu0 0.0
    %1153 = vmatprep.subr.mxu0 0.0
    %1154 = vmatpush1.msra.mxu0 0.0
    %1155 = vmatprep.subr.mxu0 0.0
    %1156 = vmatpush1.msra.mxu0 0.0
    %1157 = vmatprep.subr.mxu0 0.0
    %1158 = vmatpush1.msra.mxu0 0.0
    %1159 = vmatprep.subr.mxu0 0.0
    %1160 = vmatpush1.msra.mxu0 0.0
    %1161 = vmatprep.subr.mxu0 0.0
    %1162 = vmatpush1.msra.mxu0 0.0
    %1163 = vmatprep.subr.mxu0 0.0
    %1164 = vmatpush1.msra.mxu0 0.0
    %1165 = vmatprep.subr.mxu0 0.0
    %1166 = vmatpush1.msra.mxu0 0.0
    %1167 = vmatprep.subr.mxu0 0.0
    %1168 = vmatpush1.msra.mxu0 0.0
    %1169 = vmatprep.mubr.f32.mxu0 0.0
    %1170 = vmatmul.mubr.f32.gmra.mrb[0].mxu0 %v1103
    %v1171 = vpop.f32.mrb[0].mxu0
    %v1172 = vadd.f32 0.0, %v1171
    %v1173 = vpop.f32.mrb[0].mxu0
    %1174 = vdwg.mxu0
    %v1176 = vrot.slane %v1090, 4
    %v1178 = vadd.f32 %v128, %v1176
    %v1179 = vmax.f32 %v1178, 0.0
    %v1181 = vrot.slane %v1179, 4
    %v1182 = vsel %vm148, %v1181, 0
    %1184 = vmatprep.subr.mxu0 0.0
    %1185 = vmatpush1.msra.mxu0 %v131
    %1186 = vmatprep.subr.mxu0 0.0
    %1187 = vmatpush1.msra.mxu0 %v132
    %1188 = vmatprep.subr.mxu0 0.0
    %1189 = vmatpush1.msra.mxu0 %v133
    %1190 = vmatprep.subr.mxu0 0.0
    %1191 = vmatpush1.msra.mxu0 %v134
    %1192 = vmatprep.subr.mxu0 0.0
    %1193 = vmatpush1.msra.mxu0 0.0
    %1194 = vmatprep.subr.mxu0 0.0
    %1195 = vmatpush1.msra.mxu0 0.0
    %1196 = vmatprep.subr.mxu0 0.0
    %1197 = vmatpush1.msra.mxu0 0.0
    %1198 = vmatprep.subr.mxu0 0.0
    %1199 = vmatpush1.msra.mxu0 0.0
    %1200 = vmatprep.subr.mxu0 0.0
    %1201 = vmatpush1.msra.mxu0 0.0
    %1202 = vmatprep.subr.mxu0 0.0
    %1203 = vmatpush1.msra.mxu0 0.0
    %1204 = vmatprep.subr.mxu0 0.0
    %1205 = vmatpush1.msra.mxu0 0.0
    %1206 = vmatprep.subr.mxu0 0.0
    %1207 = vmatpush1.msra.mxu0 0.0
    %1208 = vmatprep.subr.mxu0 0.0
    %1209 = vmatpush1.msra.mxu0 0.0
    %1210 = vmatprep.subr.mxu0 0.0
    %1211 = vmatpush1.msra.mxu0 0.0
    %1212 = vmatprep.subr.mxu0 0.0
    %1213 = vmatpush1.msra.mxu0 0.0
    %1214 = vmatprep.subr.mxu0 0.0
    %1215 = vmatpush1.msra.mxu0 0.0
    %1216 = vmatprep.subr.mxu0 0.0
    %1217 = vmatpush1.msra.mxu0 0.0
    %1218 = vmatprep.subr.mxu0 0.0
    %1219 = vmatpush1.msra.mxu0 0.0
    %1220 = vmatprep.subr.mxu0 0.0
    %1221 = vmatpush1.msra.mxu0 0.0
    %1222 = vmatprep.subr.mxu0 0.0
    %1223 = vmatpush1.msra.mxu0 0.0
    %1224 = vmatprep.subr.mxu0 0.0
    %1225 = vmatpush1.msra.mxu0 0.0
    %1226 = vmatprep.subr.mxu0 0.0
    %1227 = vmatpush1.msra.mxu0 0.0
    %1228 = vmatprep.subr.mxu0 0.0
    %1229 = vmatpush1.msra.mxu0 0.0
    %1230 = vmatprep.subr.mxu0 0.0
    %1231 = vmatpush1.msra.mxu0 0.0
    %1232 = vmatprep.subr.mxu0 0.0
    %1233 = vmatpush1.msra.mxu0 0.0
    %1234 = vmatprep.subr.mxu0 0.0
    %1235 = vmatpush1.msra.mxu0 0.0
    %1236 = vmatprep.subr.mxu0 0.0
    %1237 = vmatpush1.msra.mxu0 0.0
    %1238 = vmatprep.subr.mxu0 0.0
    %1239 = vmatpush1.msra.mxu0 0.0
    %1240 = vmatprep.subr.mxu0 0.0
    %1241 = vmatpush1.msra.mxu0 0.0
    %1242 = vmatprep.subr.mxu0 0.0
    %1243 = vmatpush1.msra.mxu0 0.0
    %1244 = vmatprep.subr.mxu0 0.0
    %1245 = vmatpush1.msra.mxu0 0.0
    %1246 = vmatprep.subr.mxu0 0.0
    %1247 = vmatpush1.msra.mxu0 0.0
    %1248 = vmatprep.mubr.f32.mxu0 0.0
    %1249 = vmatmul.mubr.f32.gmra.mrb[0].mxu0 %v1182
    %v1250 = vpop.f32.mrb[0].mxu0
    %v1251 = vadd.f32 0.0, %v1250
    %v1252 = vpop.f32.mrb[0].mxu0
    %1253 = vdwg.mxu0
    %v1254 = vadd.f32 %v1251, %v371
    %1256 = vrot.lane.b32.xlu0 %v1172, 32
    %v1257 = vpop.permute.xlu0 %1256
    %v1259 = vadd.f32 %v1093, %v1257
    %v1260 = vmax.f32 %v1259, 0.0
    %1262 = vrot.lane.b32.xlu0 %v1260, 96
    %v1263 = vpop.permute.xlu0 %1262
    %v1264 = vsel %vm148, %v1263, 0
    %1266 = vmatprep.subr.mxu0 0.0
    %1267 = vmatpush1.msra.mxu0 %v141
    %1268 = vmatprep.subr.mxu0 0.0
    %1269 = vmatpush1.msra.mxu0 %v142
    %1270 = vmatprep.subr.mxu0 0.0
    %1271 = vmatpush1.msra.mxu0 %v143
    %1272 = vmatprep.subr.mxu0 0.0
    %1273 = vmatpush1.msra.mxu0 %v144
    %1274 = vmatprep.subr.mxu0 0.0
    %1275 = vmatpush1.msra.mxu0 0.0
    %1276 = vmatprep.subr.mxu0 0.0
    %1277 = vmatpush1.msra.mxu0 0.0
    %1278 = vmatprep.subr.mxu0 0.0
    %1279 = vmatpush1.msra.mxu0 0.0
    %1280 = vmatprep.subr.mxu0 0.0
    %1281 = vmatpush1.msra.mxu0 0.0
    %1282 = vmatprep.subr.mxu0 0.0
    %1283 = vmatpush1.msra.mxu0 0.0
    %1284 = vmatprep.subr.mxu0 0.0
    %1285 = vmatpush1.msra.mxu0 0.0
    %1286 = vmatprep.subr.mxu0 0.0
    %1287 = vmatpush1.msra.mxu0 0.0
    %1288 = vmatprep.subr.mxu0 0.0
    %1289 = vmatpush1.msra.mxu0 0.0
    %1290 = vmatprep.subr.mxu0 0.0
    %1291 = vmatpush1.msra.mxu0 0.0
    %1292 = vmatprep.subr.mxu0 0.0
    %1293 = vmatpush1.msra.mxu0 0.0
    %1294 = vmatprep.subr.mxu0 0.0
    %1295 = vmatpush1.msra.mxu0 0.0
    %1296 = vmatprep.subr.mxu0 0.0
    %1297 = vmatpush1.msra.mxu0 0.0
    %1298 = vmatprep.subr.mxu0 0.0
    %1299 = vmatpush1.msra.mxu0 0.0
    %1300 = vmatprep.subr.mxu0 0.0
    %1301 = vmatpush1.msra.mxu0 0.0
    %1302 = vmatprep.subr.mxu0 0.0
    %1303 = vmatpush1.msra.mxu0 0.0
    %1304 = vmatprep.subr.mxu0 0.0
    %1305 = vmatpush1.msra.mxu0 0.0
    %1306 = vmatprep.subr.mxu0 0.0
    %1307 = vmatpush1.msra.mxu0 0.0
    %1308 = vmatprep.subr.mxu0 0.0
    %1309 = vmatpush1.msra.mxu0 0.0
    %1310 = vmatprep.subr.mxu0 0.0
    %1311 = vmatpush1.msra.mxu0 0.0
    %1312 = vmatprep.subr.mxu0 0.0
    %1313 = vmatpush1.msra.mxu0 0.0
    %1314 = vmatprep.subr.mxu0 0.0
    %1315 = vmatpush1.msra.mxu0 0.0
    %1316 = vmatprep.subr.mxu0 0.0
    %1317 = vmatpush1.msra.mxu0 0.0
    %1318 = vmatprep.subr.mxu0 0.0
    %1319 = vmatpush1.msra.mxu0 0.0
    %1320 = vmatprep.subr.mxu0 0.0
    %1321 = vmatpush1.msra.mxu0 0.0
    %1322 = vmatprep.subr.mxu0 0.0
    %1323 = vmatpush1.msra.mxu0 0.0
    %1324 = vmatprep.subr.mxu0 0.0
    %1325 = vmatpush1.msra.mxu0 0.0
    %1326 = vmatprep.subr.mxu0 0.0
    %1327 = vmatpush1.msra.mxu0 0.0
    %1328 = vmatprep.subr.mxu0 0.0
    %1329 = vmatpush1.msra.mxu0 0.0
    %1330 = vmatprep.mubr.f32.mxu0 0.0
    %1331 = vmatmul.mubr.f32.gmra.mrb[0].mxu0 %v1264
    %v1332 = vpop.f32.mrb[0].mxu0
    %v1333 = vadd.f32 0.0, %v1332
    %v1334 = vpop.f32.mrb[0].mxu0
    %1335 = vdwg.mxu0
    %v1337 = vrot.slane %v1251, 2
    %v1339 = vadd.f32 %v128, %v1337
    %v1340 = vmax.f32 %v1339, 0.0
    %v1342 = vrot.slane %v1340, 6
    %v1343 = vsel %vm148, %v1342, 0
    %1345 = vmatprep.subr.mxu0 0.0
    %1346 = vmatpush1.msra.mxu0 %v131
    %1347 = vmatprep.subr.mxu0 0.0
    %1348 = vmatpush1.msra.mxu0 %v132
    %1349 = vmatprep.subr.mxu0 0.0
    %1350 = vmatpush1.msra.mxu0 %v133
    %1351 = vmatprep.subr.mxu0 0.0
    %1352 = vmatpush1.msra.mxu0 %v134
    %1353 = vmatprep.subr.mxu0 0.0
    %1354 = vmatpush1.msra.mxu0 0.0
    %1355 = vmatprep.subr.mxu0 0.0
    %1356 = vmatpush1.msra.mxu0 0.0
    %1357 = vmatprep.subr.mxu0 0.0
    %1358 = vmatpush1.msra.mxu0 0.0
    %1359 = vmatprep.subr.mxu0 0.0
    %1360 = vmatpush1.msra.mxu0 0.0
    %1361 = vmatprep.subr.mxu0 0.0
    %1362 = vmatpush1.msra.mxu0 0.0
    %1363 = vmatprep.subr.mxu0 0.0
    %1364 = vmatpush1.msra.mxu0 0.0
    %1365 = vmatprep.subr.mxu0 0.0
    %1366 = vmatpush1.msra.mxu0 0.0
    %1367 = vmatprep.subr.mxu0 0.0
    %1368 = vmatpush1.msra.mxu0 0.0
    %1369 = vmatprep.subr.mxu0 0.0
    %1370 = vmatpush1.msra.mxu0 0.0
    %1371 = vmatprep.subr.mxu0 0.0
    %1372 = vmatpush1.msra.mxu0 0.0
    %1373 = vmatprep.subr.mxu0 0.0
    %1374 = vmatpush1.msra.mxu0 0.0
    %1375 = vmatprep.subr.mxu0 0.0
    %1376 = vmatpush1.msra.mxu0 0.0
    %1377 = vmatprep.subr.mxu0 0.0
    %1378 = vmatpush1.msra.mxu0 0.0
    %1379 = vmatprep.subr.mxu0 0.0
    %1380 = vmatpush1.msra.mxu0 0.0
    %1381 = vmatprep.subr.mxu0 0.0
    %1382 = vmatpush1.msra.mxu0 0.0
    %1383 = vmatprep.subr.mxu0 0.0
    %1384 = vmatpush1.msra.mxu0 0.0
    %1385 = vmatprep.subr.mxu0 0.0
    %1386 = vmatpush1.msra.mxu0 0.0
    %1387 = vmatprep.subr.mxu0 0.0
    %1388 = vmatpush1.msra.mxu0 0.0
    %1389 = vmatprep.subr.mxu0 0.0
    %1390 = vmatpush1.msra.mxu0 0.0
    %1391 = vmatprep.subr.mxu0 0.0
    %1392 = vmatpush1.msra.mxu0 0.0
    %1393 = vmatprep.subr.mxu0 0.0
    %1394 = vmatpush1.msra.mxu0 0.0
    %1395 = vmatprep.subr.mxu0 0.0
    %1396 = vmatpush1.msra.mxu0 0.0
    %1397 = vmatprep.subr.mxu0 0.0
    %1398 = vmatpush1.msra.mxu0 0.0
    %1399 = vmatprep.subr.mxu0 0.0
    %1400 = vmatpush1.msra.mxu0 0.0
    %1401 = vmatprep.subr.mxu0 0.0
    %1402 = vmatpush1.msra.mxu0 0.0
    %1403 = vmatprep.subr.mxu0 0.0
    %1404 = vmatpush1.msra.mxu0 0.0
    %1405 = vmatprep.subr.mxu0 0.0
    %1406 = vmatpush1.msra.mxu0 0.0
    %1407 = vmatprep.subr.mxu0 0.0
    %1408 = vmatpush1.msra.mxu0 0.0
    %1409 = vmatprep.mubr.f32.mxu0 0.0
    %1410 = vmatmul.mubr.f32.gmra.mrb[0].mxu0 %v1343
    %v1411 = vpop.f32.mrb[0].mxu0
    %v1412 = vadd.f32 0.0, %v1411
    %v1413 = vpop.f32.mrb[0].mxu0
    %1414 = vdwg.mxu0
    %v1415 = vadd.f32 %v1412, %v371
    %1417 = vrot.lane.b32.xlu0 %v1333, 32
    %v1418 = vpop.permute.xlu0 %1417
    %v1420 = vadd.f32 %v1254, %v1418
    %v1421 = vmax.f32 %v1420, 0.0
    %1423 = vrot.lane.b32.xlu0 %v1421, 96
    %v1424 = vpop.permute.xlu0 %1423
    %v1425 = vsel %vm148, %v1424, 0
    %1427 = vmatprep.subr.mxu0 0.0
    %1428 = vmatpush1.msra.mxu0 %v141
    %1429 = vmatprep.subr.mxu0 0.0
    %1430 = vmatpush1.msra.mxu0 %v142
    %1431 = vmatprep.subr.mxu0 0.0
    %1432 = vmatpush1.msra.mxu0 %v143
    %1433 = vmatprep.subr.mxu0 0.0
    %1434 = vmatpush1.msra.mxu0 %v144
    %1435 = vmatprep.subr.mxu0 0.0
    %1436 = vmatpush1.msra.mxu0 0.0
    %1437 = vmatprep.subr.mxu0 0.0
    %1438 = vmatpush1.msra.mxu0 0.0
    %1439 = vmatprep.subr.mxu0 0.0
    %1440 = vmatpush1.msra.mxu0 0.0
    %1441 = vmatprep.subr.mxu0 0.0
    %1442 = vmatpush1.msra.mxu0 0.0
    %1443 = vmatprep.subr.mxu0 0.0
    %1444 = vmatpush1.msra.mxu0 0.0
    %1445 = vmatprep.subr.mxu0 0.0
    %1446 = vmatpush1.msra.mxu0 0.0
    %1447 = vmatprep.subr.mxu0 0.0
    %1448 = vmatpush1.msra.mxu0 0.0
    %1449 = vmatprep.subr.mxu0 0.0
    %1450 = vmatpush1.msra.mxu0 0.0
    %1451 = vmatprep.subr.mxu0 0.0
    %1452 = vmatpush1.msra.mxu0 0.0
    %1453 = vmatprep.subr.mxu0 0.0
    %1454 = vmatpush1.msra.mxu0 0.0
    %1455 = vmatprep.subr.mxu0 0.0
    %1456 = vmatpush1.msra.mxu0 0.0
    %1457 = vmatprep.subr.mxu0 0.0
    %1458 = vmatpush1.msra.mxu0 0.0
    %1459 = vmatprep.subr.mxu0 0.0
    %1460 = vmatpush1.msra.mxu0 0.0
    %1461 = vmatprep.subr.mxu0 0.0
    %1462 = vmatpush1.msra.mxu0 0.0
    %1463 = vmatprep.subr.mxu0 0.0
    %1464 = vmatpush1.msra.mxu0 0.0
    %1465 = vmatprep.subr.mxu0 0.0
    %1466 = vmatpush1.msra.mxu0 0.0
    %1467 = vmatprep.subr.mxu0 0.0
    %1468 = vmatpush1.msra.mxu0 0.0
    %1469 = vmatprep.subr.mxu0 0.0
    %1470 = vmatpush1.msra.mxu0 0.0
    %1471 = vmatprep.subr.mxu0 0.0
    %1472 = vmatpush1.msra.mxu0 0.0
    %1473 = vmatprep.subr.mxu0 0.0
    %1474 = vmatpush1.msra.mxu0 0.0
    %1475 = vmatprep.subr.mxu0 0.0
    %1476 = vmatpush1.msra.mxu0 0.0
    %1477 = vmatprep.subr.mxu0 0.0
    %1478 = vmatpush1.msra.mxu0 0.0
    %1479 = vmatprep.subr.mxu0 0.0
    %1480 = vmatpush1.msra.mxu0 0.0
    %1481 = vmatprep.subr.mxu0 0.0
    %1482 = vmatpush1.msra.mxu0 0.0
    %1483 = vmatprep.subr.mxu0 0.0
    %1484 = vmatpush1.msra.mxu0 0.0
    %1485 = vmatprep.subr.mxu0 0.0
    %1486 = vmatpush1.msra.mxu0 0.0
    %1487 = vmatprep.subr.mxu0 0.0
    %1488 = vmatpush1.msra.mxu0 0.0
    %1489 = vmatprep.subr.mxu0 0.0
    %1490 = vmatpush1.msra.mxu0 0.0
    %1491 = vmatprep.mubr.f32.mxu0 0.0
    %1492 = vmatmul.mubr.f32.gmra.mrb[0].mxu0 %v1425
    %v1493 = vpop.f32.mrb[0].mxu0
    %v1494 = vadd.f32 0.0, %v1493
    %v1495 = vpop.f32.mrb[0].mxu0
    %1496 = vdwg.mxu0
    %1498 = vrot.lane.b32.xlu0 %v1494, 32
    %v1499 = vpop.permute.xlu0 %1498
    %v1501 = vadd.f32 %v1415, %v1499
    %v1502 = vmax.f32 %v1501, 0.0
    %v1504 = vunpack.c.l.s4 1966171168
    %v1505 = vunpack.c.0.s8 %v1504
    %v1506 = vlaneseq
    %v1507 = vshrl.u32 %v1506, 7
    %v1508 = vsub.s32 %v1505, %v1507
    %v1509 = vrot.slane %v459, %v1508
    %v1510 = vcombine.high %v1509, %v1509
    %v1512 = vunpack.c.l.s4 1966171168
    %v1513 = vunpack.c.0.s8 %v1512
    %v1514 = vlaneseq
    %v1515 = vshrl.u32 %v1514, 7
    %v1516 = vsub.s32 %v1513, %v1515
    %v1517 = vrot.slane %v1509, %v1516
    %v1519 = vunpack.c.l.s4 1966171168
    %v1520 = vunpack.c.0.s8 %v1519
    %v1521 = vlaneseq
    %v1522 = vshrl.u32 %v1521, 7
    %v1523 = vsub.s32 %v1520, %v1522
    %v1524 = vrot.slane %v1510, %v1523
    %v1528 = vunpack.c.l.s4 1966171168
    %v1529 = vunpack.c.0.s8 %v1528
    %v1530 = vlaneseq
    %v1531 = vshrl.u32 %v1530, 7
    %v1532 = vsub.s32 %v1529, %v1531
    %v1533 = vrot.slane %v620, %v1532
    %v1534 = vcombine.high %v1533, %v1533
    %v1536 = vunpack.c.l.s4 1966171168
    %v1537 = vunpack.c.0.s8 %v1536
    %v1538 = vlaneseq
    %v1539 = vshrl.u32 %v1538, 7
    %v1540 = vsub.s32 %v1537, %v1539
    %v1541 = vrot.slane %v1533, %v1540
    %v1543 = vunpack.c.l.s4 1966171168
    %v1544 = vunpack.c.0.s8 %v1543
    %v1545 = vlaneseq
    %v1546 = vshrl.u32 %v1545, 7
    %v1547 = vsub.s32 %v1544, %v1546
    %v1548 = vrot.slane %v1534, %v1547
    %v1550 = vunpack.c.l.s4 1966171168
    %v1551 = vunpack.c.0.s8 %v1550
    %v1552 = vlaneseq
    %v1553 = vshrl.u32 %v1552, 7
    %v1554 = vsub.s32 %v1551, %v1553
    %v1555 = vrot.slane %v781, %v1554
    %v1556 = vcombine.high %v1555, %v1555
    %v1558 = vunpack.c.l.s4 1966171168
    %v1559 = vunpack.c.0.s8 %v1558
    %v1560 = vlaneseq
    %v1561 = vshrl.u32 %v1560, 7
    %v1562 = vsub.s32 %v1559, %v1561
    %v1563 = vrot.slane %v1555, %v1562
    %v1565 = vunpack.c.l.s4 1966171168
    %v1566 = vunpack.c.0.s8 %v1565
    %v1567 = vlaneseq
    %v1568 = vshrl.u32 %v1567, 7
    %v1569 = vsub.s32 %v1566, %v1568
    %v1570 = vrot.slane %v1556, %v1569
    %v1572 = vunpack.c.l.s4 1966171168
    %v1573 = vunpack.c.0.s8 %v1572
    %v1574 = vlaneseq
    %v1575 = vshrl.u32 %v1574, 7
    %v1576 = vsub.s32 %v1573, %v1575
    %v1577 = vrot.slane %v938, %v1576
    %v1578 = vcombine.high %v1577, %v1577
    %v1580 = vunpack.c.l.s4 1966171168
    %v1581 = vunpack.c.0.s8 %v1580
    %v1582 = vlaneseq
    %v1583 = vshrl.u32 %v1582, 7
    %v1584 = vsub.s32 %v1581, %v1583
    %v1585 = vrot.slane %v1577, %v1584
    %v1587 = vunpack.c.l.s4 1966171168
    %v1588 = vunpack.c.0.s8 %v1587
    %v1589 = vlaneseq
    %v1590 = vshrl.u32 %v1589, 7
    %v1591 = vsub.s32 %v1588, %v1590
    %v1592 = vrot.slane %v1578, %v1591
    %v1594 = vunpack.c.l.s4 1966171168
    %v1595 = vunpack.c.0.s8 %v1594
    %v1596 = vlaneseq
    %v1597 = vshrl.u32 %v1596, 7
    %v1598 = vsub.s32 %v1595, %v1597
    %v1599 = vrot.slane %v1099, %v1598
    %v1600 = vcombine.high %v1599, %v1599
    %v1602 = vunpack.c.l.s4 1966171168
    %v1603 = vunpack.c.0.s8 %v1602
    %v1604 = vlaneseq
    %v1605 = vshrl.u32 %v1604, 7
    %v1606 = vsub.s32 %v1603, %v1605
    %v1607 = vrot.slane %v1599, %v1606
    %v1609 = vunpack.c.l.s4 1966171168
    %v1610 = vunpack.c.0.s8 %v1609
    %v1611 = vlaneseq
    %v1612 = vshrl.u32 %v1611, 7
    %v1613 = vsub.s32 %v1610, %v1612
    %v1614 = vrot.slane %v1600, %v1613
    %v1616 = vunpack.c.l.s4 1966171168
    %v1617 = vunpack.c.0.s8 %v1616
    %v1618 = vlaneseq
    %v1619 = vshrl.u32 %v1618, 7
    %v1620 = vsub.s32 %v1617, %v1619
    %v1621 = vrot.slane %v1260, %v1620
    %v1622 = vcombine.high %v1621, %v1621
    %v1624 = vunpack.c.l.s4 1966171168
    %v1625 = vunpack.c.0.s8 %v1624
    %v1626 = vlaneseq
    %v1627 = vshrl.u32 %v1626, 7
    %v1628 = vsub.s32 %v1625, %v1627
    %v1629 = vrot.slane %v1621, %v1628
    %v1631 = vunpack.c.l.s4 1966171168
    %v1632 = vunpack.c.0.s8 %v1631
    %v1633 = vlaneseq
    %v1634 = vshrl.u32 %v1633, 7
    %v1635 = vsub.s32 %v1632, %v1634
    %v1636 = vrot.slane %v1622, %v1635
    %v1638 = vunpack.c.l.s4 1966171168
    %v1639 = vunpack.c.0.s8 %v1638
    %v1640 = vlaneseq
    %v1641 = vshrl.u32 %v1640, 7
    %v1642 = vsub.s32 %v1639, %v1641
    %v1643 = vrot.slane %v1421, %v1642
    %v1644 = vcombine.high %v1643, %v1643
    %v1646 = vunpack.c.l.s4 1966171168
    %v1647 = vunpack.c.0.s8 %v1646
    %v1648 = vlaneseq
    %v1649 = vshrl.u32 %v1648, 7
    %v1650 = vsub.s32 %v1647, %v1649
    %v1651 = vrot.slane %v1643, %v1650
    %v1653 = vunpack.c.l.s4 1966171168
    %v1654 = vunpack.c.0.s8 %v1653
    %v1655 = vlaneseq
    %v1656 = vshrl.u32 %v1655, 7
    %v1657 = vsub.s32 %v1654, %v1656
    %v1658 = vrot.slane %v1644, %v1657
    %v1661 = vunpack.c.l.s4 1966171168
    %v1662 = vunpack.c.0.s8 %v1661
    %v1663 = vlaneseq
    %v1664 = vshrl.u32 %v1663, 7
    %v1665 = vsub.s32 %v1662, %v1664
    %v1666 = vrot.slane %v1502, %v1665
    %v1667 = vcombine.high %v1666, %v1666
    %v1669 = vunpack.c.l.s4 1966171168
    %v1670 = vunpack.c.0.s8 %v1669
    %v1671 = vlaneseq
    %v1672 = vshrl.u32 %v1671, 7
    %v1673 = vsub.s32 %v1670, %v1672
    %v1674 = vrot.slane %v1666, %v1673
    %v1676 = vunpack.c.l.s4 1966171168
    %v1677 = vunpack.c.0.s8 %v1676
    %v1678 = vlaneseq
    %v1679 = vshrl.u32 %v1678, 7
    %v1680 = vsub.s32 %v1677, %v1679
    %v1681 = vrot.slane %v1667, %v1680
    %v1682 = vlaneseq
    %v1683 = vshrl.u32 %v1682, 7
    %v1684 = vsub.s32 0, %v1683
    %v1685 = vrot.slane %v1541, %v1684
    %v1686 = vlaneseq
    %v1687 = vshrl.u32 %v1686, 7
    %v1688 = vsub.s32 0, %v1687
    %v1689 = vrot.slane %v1548, %v1688
    %v1692 = vlaneseq
    %v1693 = vshrl.u32 %v1692, 7
    %v1694 = vsub.s32 0, %v1693
    %v1695 = vrot.slane %v1563, %v1694
    %v1696 = vlaneseq
    %v1697 = vshrl.u32 %v1696, 7
    %v1698 = vsub.s32 0, %v1697
    %v1699 = vrot.slane %v1570, %v1698
    %v1702 = vlaneseq
    %v1703 = vshrl.u32 %v1702, 7
    %v1704 = vsub.s32 0, %v1703
    %v1705 = vrot.slane %v1585, %v1704
    %v1706 = vlaneseq
    %v1707 = vshrl.u32 %v1706, 7
    %v1708 = vsub.s32 0, %v1707
    %v1709 = vrot.slane %v1592, %v1708
    %v1712 = vlaneseq
    %v1713 = vshrl.u32 %v1712, 7
    %v1714 = vsub.s32 0, %v1713
    %v1715 = vrot.slane %v1607, %v1714
    %v1716 = vlaneseq
    %v1717 = vshrl.u32 %v1716, 7
    %v1718 = vsub.s32 0, %v1717
    %v1719 = vrot.slane %v1614, %v1718
    %v1722 = vlaneseq
    %v1723 = vshrl.u32 %v1722, 7
    %v1724 = vsub.s32 0, %v1723
    %v1725 = vrot.slane %v1629, %v1724
    %v1726 = vlaneseq
    %v1727 = vshrl.u32 %v1726, 7
    %v1728 = vsub.s32 0, %v1727
    %v1729 = vrot.slane %v1636, %v1728
    %v1732 = vlaneseq
    %v1733 = vshrl.u32 %v1732, 7
    %v1734 = vsub.s32 0, %v1733
    %v1735 = vrot.slane %v1651, %v1734
    %v1736 = vlaneseq
    %v1737 = vshrl.u32 %v1736, 7
    %v1738 = vsub.s32 0, %v1737
    %v1739 = vrot.slane %v1658, %v1738
    %v1742 = vlaneseq
    %v1743 = vshrl.u32 %v1742, 7
    %v1744 = vsub.s32 0, %v1743
    %v1745 = vrot.slane %v1674, %v1744
    %v1746 = vlaneseq
    %v1747 = vshrl.u32 %v1746, 7
    %v1748 = vsub.s32 0, %v1747
    %v1749 = vrot.slane %v1681, %v1748
    %vm1752 = vcmask 1040384
    %v1753 = vsel %vm1752, %v1517, %v1685
    %v1754 = vsel %vm1752, %v1524, %v1689
    %vm1755 = vcmask 1041408
    %v1756 = vsel %vm1755, %v1753, %v1695
    %v1757 = vsel %vm1755, %v1754, %v1699
    %vm1758 = vcmask 1042432
    %v1759 = vsel %vm1758, %v1756, %v1705
    %v1760 = vsel %vm1758, %v1757, %v1709
    %v1761 = vsel %vm52, %v1759, %v1715
    %v1762 = vsel %vm52, %v1760, %v1719
    %vm1763 = vcmask 1044480
    %v1764 = vsel %vm1763, %v1761, %v1725
    %v1765 = vsel %vm1763, %v1762, %v1729
    %vm1766 = vcmask 1045504
    %v1767 = vsel %vm1766, %v1764, %v1735
    %v1768 = vsel %vm1766, %v1765, %v1739
    %vm1769 = vcmask 1046528
    %v1770 = vsel %vm1769, %v1767, %v1745
    %v1771 = vsel %vm1769, %v1768, %v1749
    %v1772 = vld [vmem:[%s7] sm:$0xff]
    %v1773 = vld [vmem:[%s7 + $0x8] sm:$0xff]
    %v1774 = vld [vmem:[%s7 + $0x10] sm:$0xff]
    %v1775 = vld [vmem:[%s7 + $0x18] sm:$0xff]
    %v1776 = vld [vmem:[%s8] sm:$0x1]
    %v1778 = vlaneseq
    %v1779 = vshrl.u32 %v1778, 7
    %v1780 = vsub.s32 0, %v1779
    %v1781 = vrot.slane %v1776, %v1780
    %1785 = vrot.lane.b32.xlu0 %v1770, 96
    %v1786 = vpop.permute.xlu0 %1785
    %1787 = vrot.lane.b32.xlu0 %v1771, 96
    %v1788 = vpop.permute.xlu0 %1787
    %v1789 = vsel %vm148, %v1786, 0
    %v1791 = vsel %vm148, %v1788, 0
    %1793 = vmatprep.subr.mxu0 0.0
    %1794 = vmatpush1.msra.mxu0 %v1772
    %1795 = vmatprep.subr.mxu0 0.0
    %1796 = vmatpush1.msra.mxu0 %v1773
    %1797 = vmatprep.subr.mxu0 0.0
    %1798 = vmatpush1.msra.mxu0 %v1774
    %1799 = vmatprep.subr.mxu0 0.0
    %1800 = vmatpush1.msra.mxu0 %v1775
    %1801 = vmatprep.subr.mxu0 0.0
    %1802 = vmatpush1.msra.mxu0 0.0
    %1803 = vmatprep.subr.mxu0 0.0
    %1804 = vmatpush1.msra.mxu0 0.0
    %1805 = vmatprep.subr.mxu0 0.0
    %1806 = vmatpush1.msra.mxu0 0.0
    %1807 = vmatprep.subr.mxu0 0.0
    %1808 = vmatpush1.msra.mxu0 0.0
    %1809 = vmatprep.subr.mxu0 0.0
    %1810 = vmatpush1.msra.mxu0 0.0
    %1811 = vmatprep.subr.mxu0 0.0
    %1812 = vmatpush1.msra.mxu0 0.0
    %1813 = vmatprep.subr.mxu0 0.0
    %1814 = vmatpush1.msra.mxu0 0.0
    %1815 = vmatprep.subr.mxu0 0.0
    %1816 = vmatpush1.msra.mxu0 0.0
    %1817 = vmatprep.subr.mxu0 0.0
    %1818 = vmatpush1.msra.mxu0 0.0
    %1819 = vmatprep.subr.mxu0 0.0
    %1820 = vmatpush1.msra.mxu0 0.0
    %1821 = vmatprep.subr.mxu0 0.0
    %1822 = vmatpush1.msra.mxu0 0.0
    %1823 = vmatprep.subr.mxu0 0.0
    %1824 = vmatpush1.msra.mxu0 0.0
    %1825 = vmatprep.subr.mxu0 0.0
    %1826 = vmatpush1.msra.mxu0 0.0
    %1827 = vmatprep.subr.mxu0 0.0
    %1828 = vmatpush1.msra.mxu0 0.0
    %1829 = vmatprep.subr.mxu0 0.0
    %1830 = vmatpush1.msra.mxu0 0.0
    %1831 = vmatprep.subr.mxu0 0.0
    %1832 = vmatpush1.msra.mxu0 0.0
    %1833 = vmatprep.subr.mxu0 0.0
    %1834 = vmatpush1.msra.mxu0 0.0
    %1835 = vmatprep.subr.mxu0 0.0
    %1836 = vmatpush1.msra.mxu0 0.0
    %1837 = vmatprep.subr.mxu0 0.0
    %1838 = vmatpush1.msra.mxu0 0.0
    %1839 = vmatprep.subr.mxu0 0.0
    %1840 = vmatpush1.msra.mxu0 0.0
    %1841 = vmatprep.subr.mxu0 0.0
    %1842 = vmatpush1.msra.mxu0 0.0
    %1843 = vmatprep.subr.mxu0 0.0
    %1844 = vmatpush1.msra.mxu0 0.0
    %1845 = vmatprep.subr.mxu0 0.0
    %1846 = vmatpush1.msra.mxu0 0.0
    %1847 = vmatprep.subr.mxu0 0.0
    %1848 = vmatpush1.msra.mxu0 0.0
    %1849 = vmatprep.subr.mxu0 0.0
    %1850 = vmatpush1.msra.mxu0 0.0
    %1851 = vmatprep.subr.mxu0 0.0
    %1852 = vmatpush1.msra.mxu0 0.0
    %1853 = vmatprep.subr.mxu0 0.0
    %1854 = vmatpush1.msra.mxu0 0.0
    %1855 = vmatprep.subr.mxu0 0.0
    %1856 = vmatpush1.msra.mxu0 0.0
    %1857 = vmatprep.mubr.f32.mxu0 0.0
    %1858 = vmatmul.mubr.f32.gmra.mrb[0].mxu0 %v1789
    %v1859 = vpop.f32.mrb[0].mxu0
    %v1860 = vadd.f32 %v1781, %v1859
    %v1861 = vpop.f32.mrb[0].mxu0
    %1862 = vmatprep.mubr.f32.mxu0 0.0
    %1863 = vmatmul.mubr.f32.gmra.mrb[0].mxu0 %v1791
    %v1864 = vpop.f32.mrb[0].mxu0
    %v1865 = vadd.f32 %v1781, %v1864
    %v1866 = vpop.f32.mrb[0].mxu0
    %1867 = vdwg.mxu0
    %1868 = vst [vmem:[%s9] sm:$0xff] %v1860
    %1869 = vst [vmem:[%s9 + $0x8] sm:$0xff] %v1865
    %v1870 = vrot.slane %v1502, 2
    %1871 = vrot.lane.b32.xlu0 %v1870, 96
    %v1872 = vpop.permute.xlu0 %1871
    %vm1874 = vcmask 261126
    %1875 = vst.msk [vmem:[#allocation2 - $0x6] sm:$0xc0] %vm1874, %v1340
    %1876 = vst.msk [vmem:[#allocation2 - $0x4] sm:$0xc0] %vm1874, %v1872
    // Predicated region
    $region38: #{rnn_forward.1} parent=1 // pred_check
      _
    $region39: #{rnn_forward.1} parent=1 // pred_check_branch
      %1878 = sbr.rel (0) target = $region41
    $region40: #{rnn_forward.1} parent=1 // pred_region
      _
    $region41: #{rnn_forward.1} parent=1 // pred_fallthru
      _
    // Predicated region
    $region42: #{rnn_forward.1} parent=1 // pred_check
      _
    $region43: #{rnn_forward.1} parent=1 // pred_check_branch
      %1880 = sbr.rel (0) target = $region45
    $region44: #{rnn_forward.1} parent=1 // pred_region
      %s1882 = ssub.s32 64, 64
      %1883 = vsyncadd [#allocation3], %s1882
      %s1884 = sshll.u32 [#allocation2], 4
      %s1885 = int_to_ptr.vmem [resolvable:$true] %s1884
      %1890 = dma.vmem_to_hbm [thread:$0]  %s1885, 64, %s10, [#allocation3], 32, 32, 2
    $region45: #{rnn_forward.1} parent=1 // pred_fallthru
      _
    // Predicated region
    $region46: #{rnn_forward.1} parent=1 // pred_check
      _
    $region47: #{rnn_forward.1} parent=1 // pred_check_branch
      %1892 = sbr.rel (0) target = $region49
    $region48: #{rnn_forward.1} parent=1 // pred_region
      _
    $region49: #{rnn_forward.1} parent=1 // pred_fallthru
      _
    // Predicated region
    $region50: #{rnn_forward.1} parent=1 // pred_check
      _
    $region51: #{rnn_forward.1} parent=1 // pred_check_branch
      %1894 = sbr.rel (0) target = $region53
    $region52: #{rnn_forward.1} parent=1 // pred_region
      %1895 = dma.done [#allocation3], 64
    $region53: #{rnn_forward.1} parent=1 // pred_fallthru
      _
    %1896 = vsyncpa [#allocation3], 1

</llo_original>
